<compile_context>
chip_gen: v5e
topology: v5e:2x2
jax: 0.10.0
libtpu: 0.0.40
codegen_flags: <defaults>
</compile_context>

<pallas_src>
import functools
import math

import jax
import jax.numpy as jnp
from jax.experimental import pallas as pl
from jax.experimental.pallas import tpu as pltpu

# Logical (PyTorch) dims.
D_IN, D1, D2, D3 = 28 * 28, 520, 280, 140


def _round_up(n, m):
    return ((n + m - 1) // m) * m


def _num_tensorcores_per_chip():
    """Best-effort detection of TensorCores per chip (v7x = 2, v5e/v6e = 1)."""
    try:
        kind = (jax.devices()[0].device_kind or "").lower()
    except Exception:
        return 1
    return 2 if ("v7" in kind or "7x" in kind) else 1


def _encoder_kernel(x_ref, w1t_ref, w2t_ref, w3t_ref,
                    b1_ref, b2_ref, b3_ref, o_ref):
    """Fused 3-layer MLP forward for one batch tile.

    x_ref  : (BB, 784)   f32  (cast to bf16 in-kernel for the MXU)
    w?t_ref: (in, out)   bf16 (pre-transposed)
    b?_ref : (1, out)    f32
    o_ref  : (BB, 140)   f32
    """
    x = x_ref[...].astype(w1t_ref.dtype)

    h1 = jnp.dot(x, w1t_ref[...], preferred_element_type=jnp.float32)
    h1 = jnp.maximum(h1 + b1_ref[...], 0.0).astype(w2t_ref.dtype)

    h2 = jnp.dot(h1, w2t_ref[...], preferred_element_type=jnp.float32)
    h2 = jnp.maximum(h2 + b2_ref[...], 0.0).astype(w3t_ref.dtype)

    h3 = jnp.dot(h2, w3t_ref[...], preferred_element_type=jnp.float32)
    o_ref[...] = jnp.maximum(h3 + b3_ref[...], 0.0).astype(o_ref.dtype)


def prepare_encoder_params(w1, w2, w3, b1, b2, b3, compute_dtype=jnp.bfloat16):
    """One-time prep (hoisted out of the per-call path): transpose PyTorch-style
    (out, in) weights to (in, out) and cast matmul operands to bf16.  Biases
    stay f32 (bias-add + ReLU run in f32)."""
    def wt(w):
        return jnp.transpose(w).astype(compute_dtype)          # (in, out)

    def br(b):
        return b.reshape(1, -1).astype(jnp.float32)            # (1, out)

    return (wt(w1), wt(w2), wt(w3), br(b1), br(b2), br(b3))


def _vmem_limit_bytes(bb):
    """Honest per-call VMEM estimate (double buffers + in-kernel temps) + margin."""
    f32, bf16 = 4, 2
    est = (
        2 * bb * D_IN * f32                                   # x tile, double-buffered
        + 2 * bb * D3 * f32                                   # out tile, double-buffered
        + 2 * 2 * (D_IN * D1 + D1 * D2 + D2 * D3) * bf16      # bf16 weights (+2nd buffer)
        + 2 * 2 * (D1 + D2 + D3) * f32                        # biases
        + bb * (D_IN + D1 + D2 + D3) * (f32 + bf16)           # f32 accumulators + bf16 casts
    )
    return int(min(56 * 1024 * 1024, max(32 * 1024 * 1024, est + 8 * 1024 * 1024)))


@functools.partial(jax.jit, static_argnames=("block_b",))
def encoder_forward(x_nchw, params, *, block_b=1024):
    """x_nchw: (B, C, H, W) with C*H*W == 784. Returns (B, 140) float32."""
    w1t, w2t, w3t, b1r, b2r, b3r = params
    B = x_nchw.shape[0]

    # Glue: flatten (torch .view(B, -1)).  No pad, no cast — kernel casts to bf16.
    x = x_nchw.reshape(B, -1)

    # Batch tile selection:
    #  * as large as possible (up to block_b) — single-TC chips (v5e/v6e) get one
    #    big tile whenever the batch fits;
    #  * on 2-TC chips (v7x) target >= 4 grid steps (>= 2 per core) when the batch
    #    allows, so each core can hide its x-tile DMA behind MXU work.
    bb = min(block_b, _round_up(B, 8))
    if _num_tensorcores_per_chip() >= 2:
        per_step = max(128, _round_up(pl.cdiv(B, 4), 8))
        bb = min(bb, per_step)
    bb = max(8, _round_up(bb, 8))
    grid = (pl.cdiv(B, bb),)

    flops = 2 * B * (D_IN * D1 + D1 * D2 + D2 * D3)
    bytes_accessed = (B * D_IN * 4 + B * D3 * 4
                      + (D_IN * D1 + D1 * D2 + D2 * D3) * 2
                      + (D1 + D2 + D3) * 4)

    out = pl.pallas_call(
        _encoder_kernel,
        out_shape=jax.ShapeDtypeStruct((B, D3), jnp.float32),
        grid_spec=pltpu.PrefetchScalarGridSpec(
            num_scalar_prefetch=0,
            grid=grid,
            in_specs=[
                pl.BlockSpec((bb, D_IN), lambda i: (i, 0)),   # x tile (streamed, f32)
                # Grid-invariant operands: constant index_map => fetched once and
                # kept resident in VMEM across all batch tiles.
                pl.BlockSpec((D_IN, D1), lambda i: (0, 0)),   # w1^T
                pl.BlockSpec((D1, D2), lambda i: (0, 0)),     # w2^T
                pl.BlockSpec((D2, D3), lambda i: (0, 0)),     # w3^T
                pl.BlockSpec((1, D1), lambda i: (0, 0)),      # b1
                pl.BlockSpec((1, D2), lambda i: (0, 0)),      # b2
                pl.BlockSpec((1, D3), lambda i: (0, 0)),      # b3
            ],
            out_specs=pl.BlockSpec((bb, D3), lambda i: (i, 0)),
        ),
        compiler_params=pltpu.CompilerParams(
            dimension_semantics=("parallel",),
            vmem_limit_bytes=_vmem_limit_bytes(bb),
        ),
        cost_estimate=pl.CostEstimate(
            flops=flops, transcendentals=0, bytes_accessed=bytes_accessed),
    )(x, w1t, w2t, w3t, b1r, b2r, b3r)

    return out


def _reference(x_nchw, w1, w2, w3, b1, b2, b3):
    x = x_nchw.reshape(x_nchw.shape[0], -1).astype(jnp.float32)
    h = jnp.maximum(x @ w1.T + b1, 0.0)
    h = jnp.maximum(h @ w2.T + b2, 0.0)
    return jnp.maximum(h @ w3.T + b3, 0.0)


def _xavier_normal(key, out_f, in_f):
    # torch.nn.init.xavier_normal_: std = gain * sqrt(2 / (fan_in + fan_out))
    std = math.sqrt(2.0 / (in_f + out_f))
    return std * jax.random.normal(key, (out_f, in_f), dtype=jnp.float32)


if __name__ == "__main__":
    key = jax.random.PRNGKey(0)
    k_x, k_x2, k_w1, k_w2, k_w3 = jax.random.split(key, 5)

    # Deterministic parameters (shapes from Encoder.__init__ / init_weights).
    w1 = _xavier_normal(k_w1, D1, D_IN)
    w2 = _xavier_normal(k_w2, D2, D1)
    w3 = _xavier_normal(k_w3, D3, D2)
    b1 = jnp.zeros((D1,), jnp.float32)
    b2 = jnp.zeros((D2,), jnp.float32)
    b3 = jnp.zeros((D3,), jnp.float32)

    # One-time param prep (transpose + bf16 cast), reused across calls.
    params = prepare_encoder_params(w1, w2, w3, b1, b2, b3)

    # Small NCHW input consistent with the 28*28 flatten in forward().
    B = 2
    x = jax.random.normal(k_x, (B, 1, 28, 28), dtype=jnp.float32)
    out = jax.block_until_ready(encoder_forward(x, params))
    ref = _reference(x, w1, w2, w3, b1, b2, b3)
    assert out.shape == (B, D3)
    # bf16 matmul inputs with f32 accumulation -> relaxed tolerance vs f32 ref.
    assert jnp.allclose(out, ref, atol=5e-2, rtol=5e-2), \
        float(jnp.max(jnp.abs(out - ref)))

    # A larger, non-tile-aligned batch exercises the partial last block.
    B2 = 300
    x2 = jax.random.normal(k_x2, (B2, 1, 28, 28), dtype=jnp.float32)
    out2 = jax.block_until_ready(encoder_forward(x2, params))
    ref2 = _reference(x2, w1, w2, w3, b1, b2, b3)
    assert out2.shape == (B2, D3)
    assert jnp.allclose(out2, ref2, atol=5e-2, rtol=5e-2), \
        float(jnp.max(jnp.abs(out2 - ref2)))

    print("KERNEL_OK")
</pallas_src>

<mosaic_0001>
module attributes {stable_mosaic.version = 11 : i64} {
  func.func @_encoder_kernel(%arg0: i32, %arg1: memref<8x784xf32, #tpu.memory_space<vmem>>, %arg2: memref<784x520xbf16, #tpu.memory_space<vmem>>, %arg3: memref<520x280xbf16, #tpu.memory_space<vmem>>, %arg4: memref<280x140xbf16, #tpu.memory_space<vmem>>, %arg5: memref<1x520xf32, #tpu.memory_space<vmem>>, %arg6: memref<1x280xf32, #tpu.memory_space<vmem>>, %arg7: memref<1x140xf32, #tpu.memory_space<vmem>>, %arg8: memref<8x140xf32, #tpu.memory_space<vmem>>) attributes {dimension_semantics = [#tpu.dimension_semantics<parallel>], iteration_bounds = array<i64: 1>, scalar_prefetch = 0 : i64, scratch_operands = 0 : i64, tpu.core_type = #tpu.core_type<tc>, window_params = [{transform_indices = @transform_0, window_bounds = array<i64: 8, 784>}, {pipeline_mode = #tpu.pipeline_mode<synchronous>, transform_indices = @transform_1, window_bounds = array<i64: 784, 520>}, {pipeline_mode = #tpu.pipeline_mode<synchronous>, transform_indices = @transform_2, window_bounds = array<i64: 520, 280>}, {pipeline_mode = #tpu.pipeline_mode<synchronous>, transform_indices = @transform_3, window_bounds = array<i64: 280, 140>}, {pipeline_mode = #tpu.pipeline_mode<synchronous>, transform_indices = @transform_4, window_bounds = array<i64: 1, 520>}, {pipeline_mode = #tpu.pipeline_mode<synchronous>, transform_indices = @transform_5, window_bounds = array<i64: 1, 280>}, {pipeline_mode = #tpu.pipeline_mode<synchronous>, transform_indices = @transform_6, window_bounds = array<i64: 1, 140>}, {transform_indices = @transform_7, window_bounds = array<i64: 8, 140>}]} {
    %c0 = arith.constant 0 : index
    %c0_0 = arith.constant 0 : index
    %0 = vector.load %arg1[%c0, %c0_0] : memref<8x784xf32, #tpu.memory_space<vmem>>, vector<8x784xf32>
    %1 = arith.truncf %0 : vector<8x784xf32> to vector<8x784xbf16>
    %c0_1 = arith.constant 0 : index
    %c0_2 = arith.constant 0 : index
    %2 = vector.load %arg2[%c0_1, %c0_2] : memref<784x520xbf16, #tpu.memory_space<vmem>>, vector<784x520xbf16>
    %cst = arith.constant dense<0.000000e+00> : vector<8x520xf32>
    %3 = tpu.matmul %1, %2, %cst {dimension_numbers = #tpu.dot_dimension_numbers<[1], [0], [0], [1], [0, 0, 1, 1], [], []>} : vector<8x784xbf16>, vector<784x520xbf16>, vector<8x520xf32> -> vector<8x520xf32>
    %c0_3 = arith.constant 0 : index
    %c0_4 = arith.constant 0 : index
    %4 = vector.load %arg5[%c0_3, %c0_4] : memref<1x520xf32, #tpu.memory_space<vmem>>, vector<1x520xf32>
    %5 = vector.broadcast %4 : vector<1x520xf32> to vector<8x520xf32>
    %6 = arith.addf %3, %5 : vector<8x520xf32>
    %cst_5 = arith.constant 0.000000e+00 : f32
    %7 = vector.broadcast %cst_5 : f32 to vector<8x520xf32>
    %8 = arith.maximumf %6, %7 : vector<8x520xf32>
    %9 = arith.truncf %8 : vector<8x520xf32> to vector<8x520xbf16>
    %c0_6 = arith.constant 0 : index
    %c0_7 = arith.constant 0 : index
    %10 = vector.load %arg3[%c0_6, %c0_7] : memref<520x280xbf16, #tpu.memory_space<vmem>>, vector<520x280xbf16>
    %cst_8 = arith.constant dense<0.000000e+00> : vector<8x280xf32>
    %11 = tpu.matmul %9, %10, %cst_8 {dimension_numbers = #tpu.dot_dimension_numbers<[1], [0], [0], [1], [0, 0, 1, 1], [], []>} : vector<8x520xbf16>, vector<520x280xbf16>, vector<8x280xf32> -> vector<8x280xf32>
    %c0_9 = arith.constant 0 : index
    %c0_10 = arith.constant 0 : index
    %12 = vector.load %arg6[%c0_9, %c0_10] : memref<1x280xf32, #tpu.memory_space<vmem>>, vector<1x280xf32>
    %13 = vector.broadcast %12 : vector<1x280xf32> to vector<8x280xf32>
    %14 = arith.addf %11, %13 : vector<8x280xf32>
    %cst_11 = arith.constant 0.000000e+00 : f32
    %15 = vector.broadcast %cst_11 : f32 to vector<8x280xf32>
    %16 = arith.maximumf %14, %15 : vector<8x280xf32>
    %17 = arith.truncf %16 : vector<8x280xf32> to vector<8x280xbf16>
    %c0_12 = arith.constant 0 : index
    %c0_13 = arith.constant 0 : index
    %18 = vector.load %arg4[%c0_12, %c0_13] : memref<280x140xbf16, #tpu.memory_space<vmem>>, vector<280x140xbf16>
    %cst_14 = arith.constant dense<0.000000e+00> : vector<8x140xf32>
    %19 = tpu.matmul %17, %18, %cst_14 {dimension_numbers = #tpu.dot_dimension_numbers<[1], [0], [0], [1], [0, 0, 1, 1], [], []>} : vector<8x280xbf16>, vector<280x140xbf16>, vector<8x140xf32> -> vector<8x140xf32>
    %c0_15 = arith.constant 0 : index
    %c0_16 = arith.constant 0 : index
    %20 = vector.load %arg7[%c0_15, %c0_16] : memref<1x140xf32, #tpu.memory_space<vmem>>, vector<1x140xf32>
    %21 = vector.broadcast %20 : vector<1x140xf32> to vector<8x140xf32>
    %22 = arith.addf %19, %21 : vector<8x140xf32>
    %cst_17 = arith.constant 0.000000e+00 : f32
    %23 = vector.broadcast %cst_17 : f32 to vector<8x140xf32>
    %24 = arith.maximumf %22, %23 : vector<8x140xf32>
    %c0_18 = arith.constant 0 : index
    %c0_19 = arith.constant 0 : index
    %25 = vector.load %arg8[%c0_18, %c0_19] : memref<8x140xf32, #tpu.memory_space<vmem>>, vector<8x140xf32>
    tpu.vector_store %arg8[%c0_18, %c0_19], %24 {strides = array<i32>} : memref<8x140xf32, #tpu.memory_space<vmem>>, vector<8x140xf32>,
    return
  }
  func.func @transform_0(%arg0: i32) -> (i32, i32) {
    %c0_i32 = arith.constant 0 : i32
    %c0_i32_0 = arith.constant 0 : i32
    return %arg0, %c0_i32 : i32, i32
  }
  func.func @transform_1(%arg0: i32) -> (i32, i32) {
    %c0_i32 = arith.constant 0 : i32
    %c0_i32_0 = arith.constant 0 : i32
    %c0_i32_1 = arith.constant 0 : i32
    return %c0_i32, %c0_i32_0 : i32, i32
  }
  func.func @transform_2(%arg0: i32) -> (i32, i32) {
    %c0_i32 = arith.constant 0 : i32
    %c0_i32_0 = arith.constant 0 : i32
    %c0_i32_1 = arith.constant 0 : i32
    return %c0_i32, %c0_i32_0 : i32, i32
  }
  func.func @transform_3(%arg0: i32) -> (i32, i32) {
    %c0_i32 = arith.constant 0 : i32
    %c0_i32_0 = arith.constant 0 : i32
    %c0_i32_1 = arith.constant 0 : i32
    return %c0_i32, %c0_i32_0 : i32, i32
  }
  func.func @transform_4(%arg0: i32) -> (i32, i32) {
    %c0_i32 = arith.constant 0 : i32
    %c0_i32_0 = arith.constant 0 : i32
    %c0_i32_1 = arith.constant 0 : i32
    return %c0_i32, %c0_i32_0 : i32, i32
  }
  func.func @transform_5(%arg0: i32) -> (i32, i32) {
    %c0_i32 = arith.constant 0 : i32
    %c0_i32_0 = arith.constant 0 : i32
    %c0_i32_1 = arith.constant 0 : i32
    return %c0_i32, %c0_i32_0 : i32, i32
  }
  func.func @transform_6(%arg0: i32) -> (i32, i32) {
    %c0_i32 = arith.constant 0 : i32
    %c0_i32_0 = arith.constant 0 : i32
    %c0_i32_1 = arith.constant 0 : i32
    return %c0_i32, %c0_i32_0 : i32, i32
  }
  func.func @transform_7(%arg0: i32) -> (i32, i32) {
    %c0_i32 = arith.constant 0 : i32
    %c0_i32_0 = arith.constant 0 : i32
    return %arg0, %c0_i32 : i32, i32
  }
}

</mosaic_0001>

<llo_original>
// kernel: encoder_forward.1
$region0: #{encoder_forward.1}
  #allocation0 [shape = 'u32[]', space=smem, size = 0x4, offset = 0x4, fixed_abs, tag = 'smem constant byte address 0x4 - core index']
  #allocation1 [shape = 'u32[72,128]{1,0:T(1,128)}', space=vmem, size = 0x9000, scoped, tag = 'internal scratch']
  %s0 = inlined_call_operand.vmem [shape: f32[2,784], index: 0, kind: input, shape index: {}]
  %s1 = inlined_call_operand.vmem [shape: bf16[784,520], index: 1, kind: input, shape index: {}]
  %s2 = inlined_call_operand.vmem [shape: bf16[520,280], index: 2, kind: input, shape index: {}]
  %s3 = inlined_call_operand.vmem [shape: bf16[280,140], index: 3, kind: input, shape index: {}]
  %s4 = inlined_call_operand.vmem [shape: f32[1,520], index: 4, kind: input, shape index: {}]
  %s5 = inlined_call_operand.vmem [shape: f32[1,280], index: 5, kind: input, shape index: {}]
  %s6 = inlined_call_operand.vmem [shape: f32[1,140], index: 6, kind: input, shape index: {}]
  %s7 = inlined_call_operand.hbm [shape: f32[2,140], index: 7, kind: output, shape index: {}]
  %s8 = sld [smem:[#allocation0]]
  $region38: #{encoder_forward.1} parent=0
    _
  %s10 = ssub.s32 1, %s8
  %s11 = scalar_select 0, %s10, %s8
  $region1: #{encoder_forward.1} parent=0
    #allocation2 [shape = 'u8[8192]{0}', space=vmem, size = 0x2000, scoped, tag = 'output window, operand 0, single buffered']
    #allocation3 [shape = 's32[1]{0}', space=sflag, size = 0x4, scoped, tag = 'scoped memory for encoder_forward.1']
    %12 = vsyncpa [#allocation3], 0
    // Predicated region
    $region2: #{encoder_forward.1} parent=1 // pred_check
      _
    $region3: #{encoder_forward.1} parent=1 // pred_check_branch
      %14 = sbr.rel (0) target = $region5
    $region4: #{encoder_forward.1} parent=1 // pred_region
      _
    $region5: #{encoder_forward.1} parent=1 // pred_fallthru
      _
    // Predicated region
    $region6: #{encoder_forward.1} parent=1 // pred_check
      _
    $region7: #{encoder_forward.1} parent=1 // pred_check_branch
      %16 = sbr.rel (0) target = $region9
    $region8: #{encoder_forward.1} parent=1 // pred_region
      _
    $region9: #{encoder_forward.1} parent=1 // pred_fallthru
      _
    // Predicated region
    $region10: #{encoder_forward.1} parent=1 // pred_check
      _
    $region11: #{encoder_forward.1} parent=1 // pred_check_branch
      %18 = sbr.rel (0) target = $region13
    $region12: #{encoder_forward.1} parent=1 // pred_region
      _
    $region13: #{encoder_forward.1} parent=1 // pred_fallthru
      _
    // Predicated region
    $region14: #{encoder_forward.1} parent=1 // pred_check
      _
    $region15: #{encoder_forward.1} parent=1 // pred_check_branch
      %20 = sbr.rel (0) target = $region17
    $region16: #{encoder_forward.1} parent=1 // pred_region
      _
    $region17: #{encoder_forward.1} parent=1 // pred_fallthru
      _
    // Predicated region
    $region18: #{encoder_forward.1} parent=1 // pred_check
      _
    $region19: #{encoder_forward.1} parent=1 // pred_check_branch
      %22 = sbr.rel (0) target = $region21
    $region20: #{encoder_forward.1} parent=1 // pred_region
      _
    $region21: #{encoder_forward.1} parent=1 // pred_fallthru
      _
    // Predicated region
    $region22: #{encoder_forward.1} parent=1 // pred_check
      _
    $region23: #{encoder_forward.1} parent=1 // pred_check_branch
      %24 = sbr.rel (0) target = $region25
    $region24: #{encoder_forward.1} parent=1 // pred_region
      _
    $region25: #{encoder_forward.1} parent=1 // pred_fallthru
      _
    // Predicated region
    $region26: #{encoder_forward.1} parent=1 // pred_check
      _
    $region27: #{encoder_forward.1} parent=1 // pred_check_branch
      %26 = sbr.rel (0) target = $region29
    $region28: #{encoder_forward.1} parent=1 // pred_region
      _
    $region29: #{encoder_forward.1} parent=1 // pred_fallthru
      _
    %v28 = vld [vmem:[%s0] sm:$0xff]
    %v29 = vld [vmem:[%s0 + $0x8] sm:$0x3f]
    %v30 = vld [vmem:[%s0 + $0xe] sm:$0xff]
    %v31 = vld [vmem:[%s0 + $0x16] sm:$0x3f]
    %v32 = vld [vmem:[%s0 + $0x1c] sm:$0xff]
    %v33 = vld [vmem:[%s0 + $0x24] sm:$0x3f]
    %v34 = vld [vmem:[%s0 + $0x2a] sm:$0xff]
    %v35 = vld [vmem:[%s0 + $0x32] sm:$0x3f]
    %44 = vst [vmem:[#allocation1] ss:$4 sm:$0xff] %v28
    %s45 = scalar_lea.vmem [#allocation1], 1
    %46 = vst [vmem:[%s45] ss:$4 sm:$0xff] %v30
    %s47 = scalar_lea.vmem [#allocation1], 2
    %48 = vst [vmem:[%s47] ss:$4 sm:$0xff] %v32
    %s49 = scalar_lea.vmem [#allocation1], 3
    %50 = vst [vmem:[%s49] ss:$4 sm:$0xff] %v34
    %s51 = scalar_lea.vmem [#allocation1], 32
    %52 = vst [vmem:[%s51] ss:$4 sm:$0xff] %v29
    %s53 = scalar_lea.vmem [#allocation1], 33
    %54 = vst [vmem:[%s53] ss:$4 sm:$0xff] %v31
    %s55 = scalar_lea.vmem [#allocation1], 34
    %56 = vst [vmem:[%s55] ss:$4 sm:$0xff] %v33
    %s57 = scalar_lea.vmem [#allocation1], 35
    %58 = vst [vmem:[%s57] ss:$4 sm:$0xff] %v35
    %v59 = vld.sshfl [vmem:[#allocation1] sm:$0xff pattern:$0x73625140]
    %v60 = vld.sshfl [vmem:[#allocation1 + $0x8] sm:$0xff pattern:$0x73625140]
    %v61 = vld.sshfl [vmem:[#allocation1 + $0x10] sm:$0xff pattern:$0x73625140]
    %v62 = vld.sshfl [vmem:[#allocation1 + $0x18] sm:$0xff pattern:$0x73625140]
    %v63 = vld.sshfl [vmem:[#allocation1 + $0x20] sm:$0xff pattern:$0x73625140]
    %v64 = vld.sshfl [vmem:[#allocation1 + $0x28] sm:$0xff pattern:$0x73625140]
    %v65 = vld.sshfl [vmem:[#allocation1 + $0x30] sm:$0xff pattern:$0x73625140]
    %v73 = vpack.c.bf16 %v59, %v59
    %v74 = vpack.c.bf16 %v60, %v60
    %v75 = vpack.c.bf16 %v61, %v61
    %v76 = vpack.c.bf16 %v62, %v62
    %v77 = vpack.c.bf16 %v63, %v63
    %v78 = vpack.c.bf16 %v64, %v64
    %v79 = vpack.c.bf16 %v65, %v65
    %v80 = vld [vmem:[%s1] sm:$0xff]
    %v81 = vld [vmem:[%s1 + $0x8] sm:$0xff]
    %v82 = vld [vmem:[%s1 + $0x10] sm:$0xf]
    %v83 = vld [vmem:[%s1 + $0x14] sm:$0xff]
    %v84 = vld [vmem:[%s1 + $0x1c] sm:$0xff]
    %v85 = vld [vmem:[%s1 + $0x24] sm:$0xf]
    %v86 = vld [vmem:[%s1 + $0x28] sm:$0xff]
    %v87 = vld [vmem:[%s1 + $0x30] sm:$0xff]
    %v88 = vld [vmem:[%s1 + $0x38] sm:$0xf]
    %v89 = vld [vmem:[%s1 + $0x3c] sm:$0xff]
    %v90 = vld [vmem:[%s1 + $0x44] sm:$0xff]
    %v91 = vld [vmem:[%s1 + $0x4c] sm:$0xf]
    %v92 = vld [vmem:[%s1 + $0x50] sm:$0xff]
    %v93 = vld [vmem:[%s1 + $0x58] sm:$0xff]
    %v94 = vld [vmem:[%s1 + $0x60] sm:$0xf]
    %v95 = vld [vmem:[%s1 + $0x64] sm:$0xff]
    %v96 = vld [vmem:[%s1 + $0x6c] sm:$0xff]
    %v97 = vld [vmem:[%s1 + $0x74] sm:$0xf]
    %v98 = vld [vmem:[%s1 + $0x78] sm:$0xff]
    %v99 = vld [vmem:[%s1 + $0x80] sm:$0xff]
    %v100 = vld [vmem:[%s1 + $0x88] sm:$0xf]
    %v101 = vld [vmem:[%s1 + $0x8c] sm:$0xff]
    %v102 = vld [vmem:[%s1 + $0x94] sm:$0xff]
    %v103 = vld [vmem:[%s1 + $0x9c] sm:$0xf]
    %v104 = vld [vmem:[%s1 + $0xa0] sm:$0xff]
    %v105 = vld [vmem:[%s1 + $0xa8] sm:$0xff]
    %v106 = vld [vmem:[%s1 + $0xb0] sm:$0xf]
    %v107 = vld [vmem:[%s1 + $0xb4] sm:$0xff]
    %v108 = vld [vmem:[%s1 + $0xbc] sm:$0xff]
    %v109 = vld [vmem:[%s1 + $0xc4] sm:$0xf]
    %v110 = vld [vmem:[%s1 + $0xc8] sm:$0xff]
    %v111 = vld [vmem:[%s1 + $0xd0] sm:$0xff]
    %v112 = vld [vmem:[%s1 + $0xd8] sm:$0xf]
    %v113 = vld [vmem:[%s1 + $0xdc] sm:$0xff]
    %v114 = vld [vmem:[%s1 + $0xe4] sm:$0xff]
    %v115 = vld [vmem:[%s1 + $0xec] sm:$0xf]
    %v116 = vld [vmem:[%s1 + $0xf0] sm:$0xff]
    %v117 = vld [vmem:[%s1 + $0xf8] sm:$0xff]
    %v118 = vld [vmem:[%s1 + $0x100] sm:$0xf]
    %v119 = vld [vmem:[%s1 + $0x104] sm:$0xff]
    %v120 = vld [vmem:[%s1 + $0x10c] sm:$0xff]
    %v121 = vld [vmem:[%s1 + $0x114] sm:$0xf]
    %v122 = vld [vmem:[%s1 + $0x118] sm:$0xff]
    %v123 = vld [vmem:[%s1 + $0x120] sm:$0xff]
    %v124 = vld [vmem:[%s1 + $0x128] sm:$0xf]
    %v125 = vld [vmem:[%s1 + $0x12c] sm:$0xff]
    %v126 = vld [vmem:[%s1 + $0x134] sm:$0xff]
    %v127 = vld [vmem:[%s1 + $0x13c] sm:$0xf]
    %v128 = vld [vmem:[%s1 + $0x140] sm:$0xff]
    %v129 = vld [vmem:[%s1 + $0x148] sm:$0xff]
    %v130 = vld [vmem:[%s1 + $0x150] sm:$0xf]
    %v131 = vld [vmem:[%s1 + $0x154] sm:$0xff]
    %v132 = vld [vmem:[%s1 + $0x15c] sm:$0xff]
    %v133 = vld [vmem:[%s1 + $0x164] sm:$0xf]
    %v134 = vld [vmem:[%s1 + $0x168] sm:$0xff]
    %v135 = vld [vmem:[%s1 + $0x170] sm:$0xff]
    %v136 = vld [vmem:[%s1 + $0x178] sm:$0xf]
    %v137 = vld [vmem:[%s1 + $0x17c] sm:$0xff]
    %v138 = vld [vmem:[%s1 + $0x184] sm:$0xff]
    %v139 = vld [vmem:[%s1 + $0x18c] sm:$0xf]
    %v140 = vld [vmem:[%s1 + $0x190] sm:$0xff]
    %v141 = vld [vmem:[%s1 + $0x198] sm:$0xff]
    %v142 = vld [vmem:[%s1 + $0x1a0] sm:$0xf]
    %v143 = vld [vmem:[%s1 + $0x1a4] sm:$0xff]
    %v144 = vld [vmem:[%s1 + $0x1ac] sm:$0xff]
    %v145 = vld [vmem:[%s1 + $0x1b4] sm:$0xf]
    %v146 = vld [vmem:[%s1 + $0x1b8] sm:$0xff]
    %v147 = vld [vmem:[%s1 + $0x1c0] sm:$0xff]
    %v148 = vld [vmem:[%s1 + $0x1c8] sm:$0xf]
    %v149 = vld [vmem:[%s1 + $0x1cc] sm:$0xff]
    %v150 = vld [vmem:[%s1 + $0x1d4] sm:$0xff]
    %v151 = vld [vmem:[%s1 + $0x1dc] sm:$0xf]
    %v152 = vld [vmem:[%s1 + $0x1e0] sm:$0xff]
    %v153 = vld [vmem:[%s1 + $0x1e8] sm:$0xff]
    %v154 = vld [vmem:[%s1 + $0x1f0] sm:$0xf]
    %v155 = vld [vmem:[%s1 + $0x1f4] sm:$0xff]
    %v156 = vld [vmem:[%s1 + $0x1fc] sm:$0xff]
    %v157 = vld [vmem:[%s1 + $0x204] sm:$0xf]
    %v158 = vld [vmem:[%s1 + $0x208] sm:$0xff]
    %v159 = vld [vmem:[%s1 + $0x210] sm:$0xff]
    %v160 = vld [vmem:[%s1 + $0x218] sm:$0xf]
    %v161 = vld [vmem:[%s1 + $0x21c] sm:$0xff]
    %v162 = vld [vmem:[%s1 + $0x224] sm:$0xff]
    %v163 = vld [vmem:[%s1 + $0x22c] sm:$0xf]
    %v164 = vld [vmem:[%s1 + $0x230] sm:$0xff]
    %v165 = vld [vmem:[%s1 + $0x238] sm:$0xff]
    %v166 = vld [vmem:[%s1 + $0x240] sm:$0xf]
    %v167 = vld [vmem:[%s1 + $0x244] sm:$0xff]
    %v168 = vld [vmem:[%s1 + $0x24c] sm:$0xff]
    %v169 = vld [vmem:[%s1 + $0x254] sm:$0xf]
    %v170 = vld [vmem:[%s1 + $0x258] sm:$0xff]
    %v171 = vld [vmem:[%s1 + $0x260] sm:$0xff]
    %v172 = vld [vmem:[%s1 + $0x268] sm:$0xf]
    %v173 = vld [vmem:[%s1 + $0x26c] sm:$0xff]
    %v174 = vld [vmem:[%s1 + $0x274] sm:$0xff]
    %v175 = vld [vmem:[%s1 + $0x27c] sm:$0xf]
    %v176 = vld [vmem:[%s1 + $0x280] sm:$0xff]
    %v177 = vld [vmem:[%s1 + $0x288] sm:$0xff]
    %v178 = vld [vmem:[%s1 + $0x290] sm:$0xf]
    %v179 = vld [vmem:[%s1 + $0x294] sm:$0xff]
    %v180 = vld [vmem:[%s1 + $0x29c] sm:$0xff]
    %v181 = vld [vmem:[%s1 + $0x2a4] sm:$0xf]
    %v182 = vld [vmem:[%s1 + $0x2a8] sm:$0xff]
    %v183 = vld [vmem:[%s1 + $0x2b0] sm:$0xff]
    %v184 = vld [vmem:[%s1 + $0x2b8] sm:$0xf]
    %v185 = vld [vmem:[%s1 + $0x2bc] sm:$0xff]
    %v186 = vld [vmem:[%s1 + $0x2c4] sm:$0xff]
    %v187 = vld [vmem:[%s1 + $0x2cc] sm:$0xf]
    %v188 = vld [vmem:[%s1 + $0x2d0] sm:$0xff]
    %v189 = vld [vmem:[%s1 + $0x2d8] sm:$0xff]
    %v190 = vld [vmem:[%s1 + $0x2e0] sm:$0xf]
    %v191 = vld [vmem:[%s1 + $0x2e4] sm:$0xff]
    %v192 = vld [vmem:[%s1 + $0x2ec] sm:$0xff]
    %v193 = vld [vmem:[%s1 + $0x2f4] sm:$0xf]
    %v194 = vld [vmem:[%s1 + $0x2f8] sm:$0xff]
    %v195 = vld [vmem:[%s1 + $0x300] sm:$0xff]
    %v196 = vld [vmem:[%s1 + $0x308] sm:$0xf]
    %v197 = vld [vmem:[%s1 + $0x30c] sm:$0xff]
    %v198 = vld [vmem:[%s1 + $0x314] sm:$0xff]
    %v199 = vld [vmem:[%s1 + $0x31c] sm:$0xf]
    %v200 = vld [vmem:[%s1 + $0x320] sm:$0xff]
    %v201 = vld [vmem:[%s1 + $0x328] sm:$0xff]
    %v202 = vld [vmem:[%s1 + $0x330] sm:$0xf]
    %v203 = vld [vmem:[%s1 + $0x334] sm:$0xff]
    %v204 = vld [vmem:[%s1 + $0x33c] sm:$0xff]
    %v205 = vld [vmem:[%s1 + $0x344] sm:$0xf]
    %v206 = vld [vmem:[%s1 + $0x348] sm:$0xff]
    %v207 = vld [vmem:[%s1 + $0x350] sm:$0xff]
    %v208 = vld [vmem:[%s1 + $0x358] sm:$0xf]
    %v209 = vld [vmem:[%s1 + $0x35c] sm:$0xff]
    %v210 = vld [vmem:[%s1 + $0x364] sm:$0xff]
    %v211 = vld [vmem:[%s1 + $0x36c] sm:$0xf]
    %v212 = vld [vmem:[%s1 + $0x370] sm:$0xff]
    %v213 = vld [vmem:[%s1 + $0x378] sm:$0xff]
    %v214 = vld [vmem:[%s1 + $0x380] sm:$0xf]
    %v215 = vld [vmem:[%s1 + $0x384] sm:$0xff]
    %v216 = vld [vmem:[%s1 + $0x38c] sm:$0xff]
    %v217 = vld [vmem:[%s1 + $0x394] sm:$0xf]
    %v218 = vld [vmem:[%s1 + $0x398] sm:$0xff]
    %v219 = vld [vmem:[%s1 + $0x3a0] sm:$0xff]
    %v220 = vld [vmem:[%s1 + $0x3a8] sm:$0xf]
    %v221 = vld [vmem:[%s1 + $0x3ac] sm:$0xff]
    %v222 = vld [vmem:[%s1 + $0x3b4] sm:$0xff]
    %v223 = vld [vmem:[%s1 + $0x3bc] sm:$0xf]
    %v224 = vld [vmem:[%s1 + $0x3c0] sm:$0xff]
    %v225 = vld [vmem:[%s1 + $0x3c8] sm:$0xff]
    %v226 = vld [vmem:[%s1 + $0x3d0] sm:$0xf]
    %v227 = vld [vmem:[%s1 + $0x3d4] sm:$0xff]
    %v228 = vld [vmem:[%s1 + $0x3dc] sm:$0xff]
    %v229 = vld [vmem:[%s1 + $0x3e4] sm:$0xf]
    %v230 = vld [vmem:[%s1 + $0x3e8] sm:$0xff]
    %v231 = vld [vmem:[%s1 + $0x3f0] sm:$0xff]
    %v232 = vld [vmem:[%s1 + $0x3f8] sm:$0xf]
    %v233 = vld [vmem:[%s1 + $0x3fc] sm:$0xff]
    %v234 = vld [vmem:[%s1 + $0x404] sm:$0xff]
    %v235 = vld [vmem:[%s1 + $0x40c] sm:$0xf]
    %v236 = vld [vmem:[%s1 + $0x410] sm:$0xff]
    %v237 = vld [vmem:[%s1 + $0x418] sm:$0xff]
    %v238 = vld [vmem:[%s1 + $0x420] sm:$0xf]
    %v239 = vld [vmem:[%s1 + $0x424] sm:$0xff]
    %v240 = vld [vmem:[%s1 + $0x42c] sm:$0xff]
    %v241 = vld [vmem:[%s1 + $0x434] sm:$0xf]
    %v242 = vld [vmem:[%s1 + $0x438] sm:$0xff]
    %v243 = vld [vmem:[%s1 + $0x440] sm:$0xff]
    %v244 = vld [vmem:[%s1 + $0x448] sm:$0xf]
    %v245 = vld [vmem:[%s1 + $0x44c] sm:$0xff]
    %v246 = vld [vmem:[%s1 + $0x454] sm:$0xff]
    %v247 = vld [vmem:[%s1 + $0x45c] sm:$0xf]
    %v248 = vld [vmem:[%s1 + $0x460] sm:$0xff]
    %v249 = vld [vmem:[%s1 + $0x468] sm:$0xff]
    %v250 = vld [vmem:[%s1 + $0x470] sm:$0xf]
    %v251 = vld [vmem:[%s1 + $0x474] sm:$0xff]
    %v252 = vld [vmem:[%s1 + $0x47c] sm:$0xff]
    %v253 = vld [vmem:[%s1 + $0x484] sm:$0xf]
    %v254 = vld [vmem:[%s1 + $0x488] sm:$0xff]
    %v255 = vld [vmem:[%s1 + $0x490] sm:$0xff]
    %v256 = vld [vmem:[%s1 + $0x498] sm:$0xf]
    %v257 = vld [vmem:[%s1 + $0x49c] sm:$0xff]
    %v258 = vld [vmem:[%s1 + $0x4a4] sm:$0xff]
    %v259 = vld [vmem:[%s1 + $0x4ac] sm:$0xf]
    %v260 = vld [vmem:[%s1 + $0x4b0] sm:$0xff]
    %v261 = vld [vmem:[%s1 + $0x4b8] sm:$0xff]
    %v262 = vld [vmem:[%s1 + $0x4c0] sm:$0xf]
    %v263 = vld [vmem:[%s1 + $0x4c4] sm:$0xff]
    %v264 = vld [vmem:[%s1 + $0x4cc] sm:$0xff]
    %v265 = vld [vmem:[%s1 + $0x4d4] sm:$0xf]
    %v266 = vld [vmem:[%s1 + $0x4d8] sm:$0xff]
    %v267 = vld [vmem:[%s1 + $0x4e0] sm:$0xff]
    %v268 = vld [vmem:[%s1 + $0x4e8] sm:$0xf]
    %v269 = vld [vmem:[%s1 + $0x4ec] sm:$0xff]
    %v270 = vld [vmem:[%s1 + $0x4f4] sm:$0xff]
    %v271 = vld [vmem:[%s1 + $0x4fc] sm:$0xf]
    %v272 = vld [vmem:[%s1 + $0x500] sm:$0xff]
    %v273 = vld [vmem:[%s1 + $0x508] sm:$0xff]
    %v274 = vld [vmem:[%s1 + $0x510] sm:$0xf]
    %v275 = vld [vmem:[%s1 + $0x514] sm:$0xff]
    %v276 = vld [vmem:[%s1 + $0x51c] sm:$0xff]
    %v277 = vld [vmem:[%s1 + $0x524] sm:$0xf]
    %v278 = vld [vmem:[%s1 + $0x528] sm:$0xff]
    %v279 = vld [vmem:[%s1 + $0x530] sm:$0xff]
    %v280 = vld [vmem:[%s1 + $0x538] sm:$0xf]
    %v281 = vld [vmem:[%s1 + $0x53c] sm:$0xff]
    %v282 = vld [vmem:[%s1 + $0x544] sm:$0xff]
    %v283 = vld [vmem:[%s1 + $0x54c] sm:$0xf]
    %v284 = vld [vmem:[%s1 + $0x550] sm:$0xff]
    %v285 = vld [vmem:[%s1 + $0x558] sm:$0xff]
    %v286 = vld [vmem:[%s1 + $0x560] sm:$0xf]
    %v287 = vld [vmem:[%s1 + $0x564] sm:$0xff]
    %v288 = vld [vmem:[%s1 + $0x56c] sm:$0xff]
    %v289 = vld [vmem:[%s1 + $0x574] sm:$0xf]
    %v290 = vld [vmem:[%s1 + $0x578] sm:$0xff]
    %v291 = vld [vmem:[%s1 + $0x580] sm:$0xff]
    %v292 = vld [vmem:[%s1 + $0x588] sm:$0xf]
    %v293 = vld [vmem:[%s1 + $0x58c] sm:$0xff]
    %v294 = vld [vmem:[%s1 + $0x594] sm:$0xff]
    %v295 = vld [vmem:[%s1 + $0x59c] sm:$0xf]
    %v296 = vld [vmem:[%s1 + $0x5a0] sm:$0xff]
    %v297 = vld [vmem:[%s1 + $0x5a8] sm:$0xff]
    %v298 = vld [vmem:[%s1 + $0x5b0] sm:$0xf]
    %v299 = vld [vmem:[%s1 + $0x5b4] sm:$0xff]
    %v300 = vld [vmem:[%s1 + $0x5bc] sm:$0xff]
    %v301 = vld [vmem:[%s1 + $0x5c4] sm:$0xf]
    %v302 = vld [vmem:[%s1 + $0x5c8] sm:$0xff]
    %v303 = vld [vmem:[%s1 + $0x5d0] sm:$0xff]
    %v304 = vld [vmem:[%s1 + $0x5d8] sm:$0xf]
    %v305 = vld [vmem:[%s1 + $0x5dc] sm:$0xff]
    %v306 = vld [vmem:[%s1 + $0x5e4] sm:$0xff]
    %v307 = vld [vmem:[%s1 + $0x5ec] sm:$0xf]
    %v308 = vld [vmem:[%s1 + $0x5f0] sm:$0xff]
    %v309 = vld [vmem:[%s1 + $0x5f8] sm:$0xff]
    %v310 = vld [vmem:[%s1 + $0x600] sm:$0xf]
    %v311 = vld [vmem:[%s1 + $0x604] sm:$0xff]
    %v312 = vld [vmem:[%s1 + $0x60c] sm:$0xff]
    %v313 = vld [vmem:[%s1 + $0x614] sm:$0xf]
    %v314 = vld [vmem:[%s1 + $0x618] sm:$0xff]
    %v315 = vld [vmem:[%s1 + $0x620] sm:$0xff]
    %v316 = vld [vmem:[%s1 + $0x628] sm:$0xf]
    %v317 = vld [vmem:[%s1 + $0x62c] sm:$0xff]
    %v318 = vld [vmem:[%s1 + $0x634] sm:$0xff]
    %v319 = vld [vmem:[%s1 + $0x63c] sm:$0xf]
    %v320 = vld [vmem:[%s1 + $0x640] sm:$0xff]
    %v321 = vld [vmem:[%s1 + $0x648] sm:$0xff]
    %v322 = vld [vmem:[%s1 + $0x650] sm:$0xf]
    %v323 = vld [vmem:[%s1 + $0x654] sm:$0xff]
    %v324 = vld [vmem:[%s1 + $0x65c] sm:$0xff]
    %v325 = vld [vmem:[%s1 + $0x664] sm:$0xf]
    %v326 = vld [vmem:[%s1 + $0x668] sm:$0xff]
    %v327 = vld [vmem:[%s1 + $0x670] sm:$0xff]
    %v328 = vld [vmem:[%s1 + $0x678] sm:$0xf]
    %v329 = vld [vmem:[%s1 + $0x67c] sm:$0xff]
    %v330 = vld [vmem:[%s1 + $0x684] sm:$0xff]
    %v331 = vld [vmem:[%s1 + $0x68c] sm:$0xf]
    %v332 = vld [vmem:[%s1 + $0x690] sm:$0xff]
    %v333 = vld [vmem:[%s1 + $0x698] sm:$0xff]
    %v334 = vld [vmem:[%s1 + $0x6a0] sm:$0xf]
    %v335 = vld [vmem:[%s1 + $0x6a4] sm:$0xff]
    %v336 = vld [vmem:[%s1 + $0x6ac] sm:$0xff]
    %v337 = vld [vmem:[%s1 + $0x6b4] sm:$0xf]
    %v338 = vld [vmem:[%s1 + $0x6b8] sm:$0xff]
    %v339 = vld [vmem:[%s1 + $0x6c0] sm:$0xff]
    %v340 = vld [vmem:[%s1 + $0x6c8] sm:$0xf]
    %v341 = vld [vmem:[%s1 + $0x6cc] sm:$0xff]
    %v342 = vld [vmem:[%s1 + $0x6d4] sm:$0xff]
    %v343 = vld [vmem:[%s1 + $0x6dc] sm:$0xf]
    %v344 = vld [vmem:[%s1 + $0x6e0] sm:$0xff]
    %v345 = vld [vmem:[%s1 + $0x6e8] sm:$0xff]
    %v346 = vld [vmem:[%s1 + $0x6f0] sm:$0xf]
    %v347 = vld [vmem:[%s1 + $0x6f4] sm:$0xff]
    %v348 = vld [vmem:[%s1 + $0x6fc] sm:$0xff]
    %v349 = vld [vmem:[%s1 + $0x704] sm:$0xf]
    %v350 = vld [vmem:[%s1 + $0x708] sm:$0xff]
    %v351 = vld [vmem:[%s1 + $0x710] sm:$0xff]
    %v352 = vld [vmem:[%s1 + $0x718] sm:$0xf]
    %v353 = vld [vmem:[%s1 + $0x71c] sm:$0xff]
    %v354 = vld [vmem:[%s1 + $0x724] sm:$0xff]
    %v355 = vld [vmem:[%s1 + $0x72c] sm:$0xf]
    %v356 = vld [vmem:[%s1 + $0x730] sm:$0xff]
    %v357 = vld [vmem:[%s1 + $0x738] sm:$0xff]
    %v358 = vld [vmem:[%s1 + $0x740] sm:$0xf]
    %v359 = vld [vmem:[%s1 + $0x744] sm:$0xff]
    %v360 = vld [vmem:[%s1 + $0x74c] sm:$0xff]
    %v361 = vld [vmem:[%s1 + $0x754] sm:$0xf]
    %v362 = vld [vmem:[%s1 + $0x758] sm:$0xff]
    %v363 = vld [vmem:[%s1 + $0x760] sm:$0xff]
    %v364 = vld [vmem:[%s1 + $0x768] sm:$0xf]
    %v365 = vld [vmem:[%s1 + $0x76c] sm:$0xff]
    %v366 = vld [vmem:[%s1 + $0x774] sm:$0xff]
    %v367 = vld [vmem:[%s1 + $0x77c] sm:$0xf]
    %v368 = vld [vmem:[%s1 + $0x780] sm:$0xff]
    %v369 = vld [vmem:[%s1 + $0x788] sm:$0xff]
    %v370 = vld [vmem:[%s1 + $0x790] sm:$0xf]
    %v371 = vld [vmem:[%s1 + $0x794] sm:$0xff]
    %v372 = vld [vmem:[%s1 + $0x79c] sm:$0xff]
    %v373 = vld [vmem:[%s1 + $0x7a4] sm:$0xf]
    %v374 = vld [vmem:[%s4] sm:$0x1f]
    %v376 = vperm.slane %v374, 0
    %v377 = vperm.slane %v374, 1
    %v378 = vperm.slane %v374, 2
    %v379 = vperm.slane %v374, 3
    %v380 = vperm.slane %v374, 4
    %v680 = vunpack.c.l.b16 %v80
    %v681 = vunpack.c.h.b16 %v80
    %v682 = vunpack.c.l.b16 %v81
    %v683 = vunpack.c.h.b16 %v81
    %v684 = vunpack.c.l.b16 %v82
    %v685 = vunpack.c.l.b16 %v83
    %v686 = vunpack.c.h.b16 %v83
    %v687 = vunpack.c.l.b16 %v84
    %v688 = vunpack.c.h.b16 %v84
    %v689 = vunpack.c.l.b16 %v85
    %v690 = vunpack.c.l.b16 %v86
    %v691 = vunpack.c.h.b16 %v86
    %v692 = vunpack.c.l.b16 %v87
    %v693 = vunpack.c.h.b16 %v87
    %v694 = vunpack.c.l.b16 %v88
    %v695 = vunpack.c.l.b16 %v89
    %v696 = vunpack.c.h.b16 %v89
    %v697 = vunpack.c.l.b16 %v90
    %v698 = vunpack.c.h.b16 %v90
    %v699 = vunpack.c.l.b16 %v91
    %v700 = vunpack.c.l.b16 %v92
    %v701 = vunpack.c.h.b16 %v92
    %v702 = vunpack.c.l.b16 %v93
    %v703 = vunpack.c.h.b16 %v93
    %v704 = vunpack.c.l.b16 %v94
    %v705 = vunpack.c.l.b16 %v95
    %v706 = vunpack.c.h.b16 %v95
    %v707 = vunpack.c.l.b16 %v96
    %v708 = vunpack.c.h.b16 %v96
    %v709 = vunpack.c.l.b16 %v97
    %v710 = vunpack.c.l.b16 %v98
    %v711 = vunpack.c.h.b16 %v98
    %v712 = vunpack.c.l.b16 %v99
    %v713 = vunpack.c.h.b16 %v99
    %v714 = vunpack.c.l.b16 %v100
    %v715 = vunpack.c.l.b16 %v101
    %v716 = vunpack.c.h.b16 %v101
    %v717 = vunpack.c.l.b16 %v102
    %v718 = vunpack.c.h.b16 %v102
    %v719 = vunpack.c.l.b16 %v103
    %v720 = vunpack.c.l.b16 %v104
    %v721 = vunpack.c.h.b16 %v104
    %v722 = vunpack.c.l.b16 %v105
    %v723 = vunpack.c.h.b16 %v105
    %v724 = vunpack.c.l.b16 %v106
    %v725 = vunpack.c.l.b16 %v107
    %v726 = vunpack.c.h.b16 %v107
    %v727 = vunpack.c.l.b16 %v108
    %v728 = vunpack.c.h.b16 %v108
    %v729 = vunpack.c.l.b16 %v109
    %v730 = vunpack.c.l.b16 %v110
    %v731 = vunpack.c.h.b16 %v110
    %v732 = vunpack.c.l.b16 %v111
    %v733 = vunpack.c.h.b16 %v111
    %v734 = vunpack.c.l.b16 %v112
    %v735 = vunpack.c.l.b16 %v113
    %v736 = vunpack.c.h.b16 %v113
    %v737 = vunpack.c.l.b16 %v114
    %v738 = vunpack.c.h.b16 %v114
    %v739 = vunpack.c.l.b16 %v115
    %v740 = vunpack.c.l.b16 %v116
    %v741 = vunpack.c.h.b16 %v116
    %v742 = vunpack.c.l.b16 %v117
    %v743 = vunpack.c.h.b16 %v117
    %v744 = vunpack.c.l.b16 %v118
    %v745 = vunpack.c.l.b16 %v119
    %v746 = vunpack.c.h.b16 %v119
    %v747 = vunpack.c.l.b16 %v120
    %v748 = vunpack.c.h.b16 %v120
    %v749 = vunpack.c.l.b16 %v121
    %v750 = vunpack.c.l.b16 %v122
    %v751 = vunpack.c.h.b16 %v122
    %v752 = vunpack.c.l.b16 %v123
    %v753 = vunpack.c.h.b16 %v123
    %v754 = vunpack.c.l.b16 %v124
    %v755 = vunpack.c.l.b16 %v125
    %v756 = vunpack.c.h.b16 %v125
    %v757 = vunpack.c.l.b16 %v126
    %v758 = vunpack.c.h.b16 %v126
    %v759 = vunpack.c.l.b16 %v127
    %v760 = vunpack.c.l.b16 %v128
    %v761 = vunpack.c.h.b16 %v128
    %v762 = vunpack.c.l.b16 %v129
    %v763 = vunpack.c.h.b16 %v129
    %v764 = vunpack.c.l.b16 %v130
    %v765 = vunpack.c.l.b16 %v131
    %v766 = vunpack.c.h.b16 %v131
    %v767 = vunpack.c.l.b16 %v132
    %v768 = vunpack.c.h.b16 %v132
    %v769 = vunpack.c.l.b16 %v133
    %v770 = vunpack.c.l.b16 %v134
    %v771 = vunpack.c.h.b16 %v134
    %v772 = vunpack.c.l.b16 %v135
    %v773 = vunpack.c.h.b16 %v135
    %v774 = vunpack.c.l.b16 %v136
    %v775 = vunpack.c.l.b16 %v137
    %v776 = vunpack.c.h.b16 %v137
    %v777 = vunpack.c.l.b16 %v138
    %v778 = vunpack.c.h.b16 %v138
    %v779 = vunpack.c.l.b16 %v139
    %v780 = vunpack.c.l.b16 %v140
    %v781 = vunpack.c.h.b16 %v140
    %v782 = vunpack.c.l.b16 %v141
    %v783 = vunpack.c.h.b16 %v141
    %v784 = vunpack.c.l.b16 %v142
    %v785 = vunpack.c.l.b16 %v143
    %v786 = vunpack.c.h.b16 %v143
    %v787 = vunpack.c.l.b16 %v144
    %v788 = vunpack.c.h.b16 %v144
    %v789 = vunpack.c.l.b16 %v145
    %v790 = vunpack.c.l.b16 %v146
    %v791 = vunpack.c.h.b16 %v146
    %v792 = vunpack.c.l.b16 %v147
    %v793 = vunpack.c.h.b16 %v147
    %v794 = vunpack.c.l.b16 %v148
    %v795 = vunpack.c.l.b16 %v149
    %v796 = vunpack.c.h.b16 %v149
    %v797 = vunpack.c.l.b16 %v150
    %v798 = vunpack.c.h.b16 %v150
    %v799 = vunpack.c.l.b16 %v151
    %v800 = vunpack.c.l.b16 %v152
    %v801 = vunpack.c.h.b16 %v152
    %v802 = vunpack.c.l.b16 %v153
    %v803 = vunpack.c.h.b16 %v153
    %v804 = vunpack.c.l.b16 %v154
    %v805 = vunpack.c.l.b16 %v155
    %v806 = vunpack.c.h.b16 %v155
    %v807 = vunpack.c.l.b16 %v156
    %v808 = vunpack.c.h.b16 %v156
    %v809 = vunpack.c.l.b16 %v157
    %v810 = vunpack.c.l.b16 %v158
    %v811 = vunpack.c.h.b16 %v158
    %v812 = vunpack.c.l.b16 %v159
    %v813 = vunpack.c.h.b16 %v159
    %v814 = vunpack.c.l.b16 %v160
    %v815 = vunpack.c.l.b16 %v161
    %v816 = vunpack.c.h.b16 %v161
    %v817 = vunpack.c.l.b16 %v162
    %v818 = vunpack.c.h.b16 %v162
    %v819 = vunpack.c.l.b16 %v163
    %v820 = vunpack.c.l.b16 %v164
    %v821 = vunpack.c.h.b16 %v164
    %v822 = vunpack.c.l.b16 %v165
    %v823 = vunpack.c.h.b16 %v165
    %v824 = vunpack.c.l.b16 %v166
    %v825 = vunpack.c.l.b16 %v167
    %v826 = vunpack.c.h.b16 %v167
    %v827 = vunpack.c.l.b16 %v168
    %v828 = vunpack.c.h.b16 %v168
    %v829 = vunpack.c.l.b16 %v169
    %v830 = vunpack.c.l.b16 %v170
    %v831 = vunpack.c.h.b16 %v170
    %v832 = vunpack.c.l.b16 %v171
    %v833 = vunpack.c.h.b16 %v171
    %v834 = vunpack.c.l.b16 %v172
    %v835 = vunpack.c.l.b16 %v173
    %v836 = vunpack.c.h.b16 %v173
    %v837 = vunpack.c.l.b16 %v174
    %v838 = vunpack.c.h.b16 %v174
    %v839 = vunpack.c.l.b16 %v175
    %v840 = vunpack.c.l.b16 %v176
    %v841 = vunpack.c.h.b16 %v176
    %v842 = vunpack.c.l.b16 %v177
    %v843 = vunpack.c.h.b16 %v177
    %v844 = vunpack.c.l.b16 %v178
    %v845 = vunpack.c.l.b16 %v179
    %v846 = vunpack.c.h.b16 %v179
    %v847 = vunpack.c.l.b16 %v180
    %v848 = vunpack.c.h.b16 %v180
    %v849 = vunpack.c.l.b16 %v181
    %v850 = vunpack.c.l.b16 %v182
    %v851 = vunpack.c.h.b16 %v182
    %v852 = vunpack.c.l.b16 %v183
    %v853 = vunpack.c.h.b16 %v183
    %v854 = vunpack.c.l.b16 %v184
    %v855 = vunpack.c.l.b16 %v185
    %v856 = vunpack.c.h.b16 %v185
    %v857 = vunpack.c.l.b16 %v186
    %v858 = vunpack.c.h.b16 %v186
    %v859 = vunpack.c.l.b16 %v187
    %v860 = vunpack.c.l.b16 %v188
    %v861 = vunpack.c.h.b16 %v188
    %v862 = vunpack.c.l.b16 %v189
    %v863 = vunpack.c.h.b16 %v189
    %v864 = vunpack.c.l.b16 %v190
    %v865 = vunpack.c.l.b16 %v191
    %v866 = vunpack.c.h.b16 %v191
    %v867 = vunpack.c.l.b16 %v192
    %v868 = vunpack.c.h.b16 %v192
    %v869 = vunpack.c.l.b16 %v193
    %v870 = vunpack.c.l.b16 %v194
    %v871 = vunpack.c.h.b16 %v194
    %v872 = vunpack.c.l.b16 %v195
    %v873 = vunpack.c.h.b16 %v195
    %v874 = vunpack.c.l.b16 %v196
    %v875 = vunpack.c.l.b16 %v197
    %v876 = vunpack.c.h.b16 %v197
    %v877 = vunpack.c.l.b16 %v198
    %v878 = vunpack.c.h.b16 %v198
    %v879 = vunpack.c.l.b16 %v199
    %v880 = vunpack.c.l.b16 %v200
    %v881 = vunpack.c.h.b16 %v200
    %v882 = vunpack.c.l.b16 %v201
    %v883 = vunpack.c.h.b16 %v201
    %v884 = vunpack.c.l.b16 %v202
    %v885 = vunpack.c.l.b16 %v203
    %v886 = vunpack.c.h.b16 %v203
    %v887 = vunpack.c.l.b16 %v204
    %v888 = vunpack.c.h.b16 %v204
    %v889 = vunpack.c.l.b16 %v205
    %v890 = vunpack.c.l.b16 %v206
    %v891 = vunpack.c.h.b16 %v206
    %v892 = vunpack.c.l.b16 %v207
    %v893 = vunpack.c.h.b16 %v207
    %v894 = vunpack.c.l.b16 %v208
    %v895 = vunpack.c.l.b16 %v209
    %v896 = vunpack.c.h.b16 %v209
    %v897 = vunpack.c.l.b16 %v210
    %v898 = vunpack.c.h.b16 %v210
    %v899 = vunpack.c.l.b16 %v211
    %v900 = vunpack.c.l.b16 %v212
    %v901 = vunpack.c.h.b16 %v212
    %v902 = vunpack.c.l.b16 %v213
    %v903 = vunpack.c.h.b16 %v213
    %v904 = vunpack.c.l.b16 %v214
    %v905 = vunpack.c.l.b16 %v215
    %v906 = vunpack.c.h.b16 %v215
    %v907 = vunpack.c.l.b16 %v216
    %v908 = vunpack.c.h.b16 %v216
    %v909 = vunpack.c.l.b16 %v217
    %v910 = vunpack.c.l.b16 %v218
    %v911 = vunpack.c.h.b16 %v218
    %v912 = vunpack.c.l.b16 %v219
    %v913 = vunpack.c.h.b16 %v219
    %v914 = vunpack.c.l.b16 %v220
    %v915 = vunpack.c.l.b16 %v221
    %v916 = vunpack.c.h.b16 %v221
    %v917 = vunpack.c.l.b16 %v222
    %v918 = vunpack.c.h.b16 %v222
    %v919 = vunpack.c.l.b16 %v223
    %v920 = vunpack.c.l.b16 %v224
    %v921 = vunpack.c.h.b16 %v224
    %v922 = vunpack.c.l.b16 %v225
    %v923 = vunpack.c.h.b16 %v225
    %v924 = vunpack.c.l.b16 %v226
    %v925 = vunpack.c.l.b16 %v227
    %v926 = vunpack.c.h.b16 %v227
    %v927 = vunpack.c.l.b16 %v228
    %v928 = vunpack.c.h.b16 %v228
    %v929 = vunpack.c.l.b16 %v229
    %v930 = vunpack.c.l.b16 %v230
    %v931 = vunpack.c.h.b16 %v230
    %v932 = vunpack.c.l.b16 %v231
    %v933 = vunpack.c.h.b16 %v231
    %v934 = vunpack.c.l.b16 %v232
    %v935 = vunpack.c.l.b16 %v233
    %v936 = vunpack.c.h.b16 %v233
    %v937 = vunpack.c.l.b16 %v234
    %v938 = vunpack.c.h.b16 %v234
    %v939 = vunpack.c.l.b16 %v235
    %v940 = vunpack.c.l.b16 %v236
    %v941 = vunpack.c.h.b16 %v236
    %v942 = vunpack.c.l.b16 %v237
    %v943 = vunpack.c.h.b16 %v237
    %v944 = vunpack.c.l.b16 %v238
    %v945 = vunpack.c.l.b16 %v239
    %v946 = vunpack.c.h.b16 %v239
    %v947 = vunpack.c.l.b16 %v240
    %v948 = vunpack.c.h.b16 %v240
    %v949 = vunpack.c.l.b16 %v241
    %v950 = vunpack.c.l.b16 %v242
    %v951 = vunpack.c.h.b16 %v242
    %v952 = vunpack.c.l.b16 %v243
    %v953 = vunpack.c.h.b16 %v243
    %v954 = vunpack.c.l.b16 %v244
    %v955 = vunpack.c.l.b16 %v245
    %v956 = vunpack.c.h.b16 %v245
    %v957 = vunpack.c.l.b16 %v246
    %v958 = vunpack.c.h.b16 %v246
    %v959 = vunpack.c.l.b16 %v247
    %v960 = vunpack.c.l.b16 %v248
    %v961 = vunpack.c.h.b16 %v248
    %v962 = vunpack.c.l.b16 %v249
    %v963 = vunpack.c.h.b16 %v249
    %v964 = vunpack.c.l.b16 %v250
    %v965 = vunpack.c.l.b16 %v251
    %v966 = vunpack.c.h.b16 %v251
    %v967 = vunpack.c.l.b16 %v252
    %v968 = vunpack.c.h.b16 %v252
    %v969 = vunpack.c.l.b16 %v253
    %v970 = vunpack.c.l.b16 %v254
    %v971 = vunpack.c.h.b16 %v254
    %v972 = vunpack.c.l.b16 %v255
    %v973 = vunpack.c.h.b16 %v255
    %v974 = vunpack.c.l.b16 %v256
    %v975 = vunpack.c.l.b16 %v257
    %v976 = vunpack.c.h.b16 %v257
    %v977 = vunpack.c.l.b16 %v258
    %v978 = vunpack.c.h.b16 %v258
    %v979 = vunpack.c.l.b16 %v259
    %v980 = vunpack.c.l.b16 %v260
    %v981 = vunpack.c.h.b16 %v260
    %v982 = vunpack.c.l.b16 %v261
    %v983 = vunpack.c.h.b16 %v261
    %v984 = vunpack.c.l.b16 %v262
    %v985 = vunpack.c.l.b16 %v263
    %v986 = vunpack.c.h.b16 %v263
    %v987 = vunpack.c.l.b16 %v264
    %v988 = vunpack.c.h.b16 %v264
    %v989 = vunpack.c.l.b16 %v265
    %v990 = vunpack.c.l.b16 %v266
    %v991 = vunpack.c.h.b16 %v266
    %v992 = vunpack.c.l.b16 %v267
    %v993 = vunpack.c.h.b16 %v267
    %v994 = vunpack.c.l.b16 %v268
    %v995 = vunpack.c.l.b16 %v269
    %v996 = vunpack.c.h.b16 %v269
    %v997 = vunpack.c.l.b16 %v270
    %v998 = vunpack.c.h.b16 %v270
    %v999 = vunpack.c.l.b16 %v271
    %v1000 = vunpack.c.l.b16 %v272
    %v1001 = vunpack.c.h.b16 %v272
    %v1002 = vunpack.c.l.b16 %v273
    %v1003 = vunpack.c.h.b16 %v273
    %v1004 = vunpack.c.l.b16 %v274
    %v1005 = vunpack.c.l.b16 %v275
    %v1006 = vunpack.c.h.b16 %v275
    %v1007 = vunpack.c.l.b16 %v276
    %v1008 = vunpack.c.h.b16 %v276
    %v1009 = vunpack.c.l.b16 %v277
    %v1010 = vunpack.c.l.b16 %v278
    %v1011 = vunpack.c.h.b16 %v278
    %v1012 = vunpack.c.l.b16 %v279
    %v1013 = vunpack.c.h.b16 %v279
    %v1014 = vunpack.c.l.b16 %v280
    %v1015 = vunpack.c.l.b16 %v281
    %v1016 = vunpack.c.h.b16 %v281
    %v1017 = vunpack.c.l.b16 %v282
    %v1018 = vunpack.c.h.b16 %v282
    %v1019 = vunpack.c.l.b16 %v283
    %v1020 = vunpack.c.l.b16 %v284
    %v1021 = vunpack.c.h.b16 %v284
    %v1022 = vunpack.c.l.b16 %v285
    %v1023 = vunpack.c.h.b16 %v285
    %v1024 = vunpack.c.l.b16 %v286
    %v1025 = vunpack.c.l.b16 %v287
    %v1026 = vunpack.c.h.b16 %v287
    %v1027 = vunpack.c.l.b16 %v288
    %v1028 = vunpack.c.h.b16 %v288
    %v1029 = vunpack.c.l.b16 %v289
    %v1030 = vunpack.c.l.b16 %v290
    %v1031 = vunpack.c.h.b16 %v290
    %v1032 = vunpack.c.l.b16 %v291
    %v1033 = vunpack.c.h.b16 %v291
    %v1034 = vunpack.c.l.b16 %v292
    %v1035 = vunpack.c.l.b16 %v293
    %v1036 = vunpack.c.h.b16 %v293
    %v1037 = vunpack.c.l.b16 %v294
    %v1038 = vunpack.c.h.b16 %v294
    %v1039 = vunpack.c.l.b16 %v295
    %v1040 = vunpack.c.l.b16 %v296
    %v1041 = vunpack.c.h.b16 %v296
    %v1042 = vunpack.c.l.b16 %v297
    %v1043 = vunpack.c.h.b16 %v297
    %v1044 = vunpack.c.l.b16 %v298
    %v1045 = vunpack.c.l.b16 %v299
    %v1046 = vunpack.c.h.b16 %v299
    %v1047 = vunpack.c.l.b16 %v300
    %v1048 = vunpack.c.h.b16 %v300
    %v1049 = vunpack.c.l.b16 %v301
    %v1050 = vunpack.c.l.b16 %v302
    %v1051 = vunpack.c.h.b16 %v302
    %v1052 = vunpack.c.l.b16 %v303
    %v1053 = vunpack.c.h.b16 %v303
    %v1054 = vunpack.c.l.b16 %v304
    %v1055 = vunpack.c.l.b16 %v305
    %v1056 = vunpack.c.h.b16 %v305
    %v1057 = vunpack.c.l.b16 %v306
    %v1058 = vunpack.c.h.b16 %v306
    %v1059 = vunpack.c.l.b16 %v307
    %v1060 = vunpack.c.l.b16 %v308
    %v1061 = vunpack.c.h.b16 %v308
    %v1062 = vunpack.c.l.b16 %v309
    %v1063 = vunpack.c.h.b16 %v309
    %v1064 = vunpack.c.l.b16 %v310
    %v1065 = vunpack.c.l.b16 %v311
    %v1066 = vunpack.c.h.b16 %v311
    %v1067 = vunpack.c.l.b16 %v312
    %v1068 = vunpack.c.h.b16 %v312
    %v1069 = vunpack.c.l.b16 %v313
    %v1070 = vunpack.c.l.b16 %v314
    %v1071 = vunpack.c.h.b16 %v314
    %v1072 = vunpack.c.l.b16 %v315
    %v1073 = vunpack.c.h.b16 %v315
    %v1074 = vunpack.c.l.b16 %v316
    %v1075 = vunpack.c.l.b16 %v317
    %v1076 = vunpack.c.h.b16 %v317
    %v1077 = vunpack.c.l.b16 %v318
    %v1078 = vunpack.c.h.b16 %v318
    %v1079 = vunpack.c.l.b16 %v319
    %v1080 = vunpack.c.l.b16 %v320
    %v1081 = vunpack.c.h.b16 %v320
    %v1082 = vunpack.c.l.b16 %v321
    %v1083 = vunpack.c.h.b16 %v321
    %v1084 = vunpack.c.l.b16 %v322
    %v1085 = vunpack.c.l.b16 %v323
    %v1086 = vunpack.c.h.b16 %v323
    %v1087 = vunpack.c.l.b16 %v324
    %v1088 = vunpack.c.h.b16 %v324
    %v1089 = vunpack.c.l.b16 %v325
    %v1090 = vunpack.c.l.b16 %v326
    %v1091 = vunpack.c.h.b16 %v326
    %v1092 = vunpack.c.l.b16 %v327
    %v1093 = vunpack.c.h.b16 %v327
    %v1094 = vunpack.c.l.b16 %v328
    %v1095 = vunpack.c.l.b16 %v329
    %v1096 = vunpack.c.h.b16 %v329
    %v1097 = vunpack.c.l.b16 %v330
    %v1098 = vunpack.c.h.b16 %v330
    %v1099 = vunpack.c.l.b16 %v331
    %v1100 = vunpack.c.l.b16 %v332
    %v1101 = vunpack.c.h.b16 %v332
    %v1102 = vunpack.c.l.b16 %v333
    %v1103 = vunpack.c.h.b16 %v333
    %v1104 = vunpack.c.l.b16 %v334
    %v1105 = vunpack.c.l.b16 %v335
    %v1106 = vunpack.c.h.b16 %v335
    %v1107 = vunpack.c.l.b16 %v336
    %v1108 = vunpack.c.h.b16 %v336
    %v1109 = vunpack.c.l.b16 %v337
    %v1110 = vunpack.c.l.b16 %v338
    %v1111 = vunpack.c.h.b16 %v338
    %v1112 = vunpack.c.l.b16 %v339
    %v1113 = vunpack.c.h.b16 %v339
    %v1114 = vunpack.c.l.b16 %v340
    %v1115 = vunpack.c.l.b16 %v341
    %v1116 = vunpack.c.h.b16 %v341
    %v1117 = vunpack.c.l.b16 %v342
    %v1118 = vunpack.c.h.b16 %v342
    %v1119 = vunpack.c.l.b16 %v343
    %v1120 = vunpack.c.l.b16 %v344
    %v1121 = vunpack.c.h.b16 %v344
    %v1122 = vunpack.c.l.b16 %v345
    %v1123 = vunpack.c.h.b16 %v345
    %v1124 = vunpack.c.l.b16 %v346
    %v1125 = vunpack.c.l.b16 %v347
    %v1126 = vunpack.c.h.b16 %v347
    %v1127 = vunpack.c.l.b16 %v348
    %v1128 = vunpack.c.h.b16 %v348
    %v1129 = vunpack.c.l.b16 %v349
    %v1130 = vunpack.c.l.b16 %v350
    %v1131 = vunpack.c.h.b16 %v350
    %v1132 = vunpack.c.l.b16 %v351
    %v1133 = vunpack.c.h.b16 %v351
    %v1134 = vunpack.c.l.b16 %v352
    %v1135 = vunpack.c.l.b16 %v353
    %v1136 = vunpack.c.h.b16 %v353
    %v1137 = vunpack.c.l.b16 %v354
    %v1138 = vunpack.c.h.b16 %v354
    %v1139 = vunpack.c.l.b16 %v355
    %v1140 = vunpack.c.l.b16 %v356
    %v1141 = vunpack.c.h.b16 %v356
    %v1142 = vunpack.c.l.b16 %v357
    %v1143 = vunpack.c.h.b16 %v357
    %v1144 = vunpack.c.l.b16 %v358
    %v1145 = vunpack.c.l.b16 %v359
    %v1146 = vunpack.c.h.b16 %v359
    %v1147 = vunpack.c.l.b16 %v360
    %v1148 = vunpack.c.h.b16 %v360
    %v1149 = vunpack.c.l.b16 %v361
    %v1150 = vunpack.c.l.b16 %v362
    %v1151 = vunpack.c.h.b16 %v362
    %v1152 = vunpack.c.l.b16 %v363
    %v1153 = vunpack.c.h.b16 %v363
    %v1154 = vunpack.c.l.b16 %v364
    %v1155 = vunpack.c.l.b16 %v365
    %v1156 = vunpack.c.h.b16 %v365
    %v1157 = vunpack.c.l.b16 %v366
    %v1158 = vunpack.c.h.b16 %v366
    %v1159 = vunpack.c.l.b16 %v367
    %v1160 = vunpack.c.l.b16 %v368
    %v1161 = vunpack.c.h.b16 %v368
    %v1162 = vunpack.c.l.b16 %v369
    %v1163 = vunpack.c.h.b16 %v369
    %v1164 = vunpack.c.l.b16 %v370
    %v1165 = vunpack.c.l.b16 %v371
    %v1166 = vunpack.c.h.b16 %v371
    %v1167 = vunpack.c.l.b16 %v372
    %v1168 = vunpack.c.h.b16 %v372
    %v1169 = vunpack.c.l.b16 %v373
    %v1170 = vpack.c.b16 %v685, %v680
    %v1171 = vpack.c.b16 %v686, %v681
    %v1172 = vpack.c.b16 %v687, %v682
    %v1173 = vpack.c.b16 %v688, %v683
    %v1174 = vpack.c.b16 %v689, %v684
    %v1175 = vpack.c.b16 %v695, %v690
    %v1176 = vpack.c.b16 %v696, %v691
    %v1177 = vpack.c.b16 %v697, %v692
    %v1178 = vpack.c.b16 %v698, %v693
    %v1179 = vpack.c.b16 %v699, %v694
    %v1180 = vpack.c.b16 %v705, %v700
    %v1181 = vpack.c.b16 %v706, %v701
    %v1182 = vpack.c.b16 %v707, %v702
    %v1183 = vpack.c.b16 %v708, %v703
    %v1184 = vpack.c.b16 %v709, %v704
    %v1185 = vpack.c.b16 %v715, %v710
    %v1186 = vpack.c.b16 %v716, %v711
    %v1187 = vpack.c.b16 %v717, %v712
    %v1188 = vpack.c.b16 %v718, %v713
    %v1189 = vpack.c.b16 %v719, %v714
    %v1190 = vpack.c.b16 %v725, %v720
    %v1191 = vpack.c.b16 %v726, %v721
    %v1192 = vpack.c.b16 %v727, %v722
    %v1193 = vpack.c.b16 %v728, %v723
    %v1194 = vpack.c.b16 %v729, %v724
    %v1195 = vpack.c.b16 %v735, %v730
    %v1196 = vpack.c.b16 %v736, %v731
    %v1197 = vpack.c.b16 %v737, %v732
    %v1198 = vpack.c.b16 %v738, %v733
    %v1199 = vpack.c.b16 %v739, %v734
    %v1200 = vpack.c.b16 %v745, %v740
    %v1201 = vpack.c.b16 %v746, %v741
    %v1202 = vpack.c.b16 %v747, %v742
    %v1203 = vpack.c.b16 %v748, %v743
    %v1204 = vpack.c.b16 %v749, %v744
    %v1205 = vpack.c.b16 %v755, %v750
    %v1206 = vpack.c.b16 %v756, %v751
    %v1207 = vpack.c.b16 %v757, %v752
    %v1208 = vpack.c.b16 %v758, %v753
    %v1209 = vpack.c.b16 %v759, %v754
    %v1210 = vpack.c.b16 %v765, %v760
    %v1211 = vpack.c.b16 %v766, %v761
    %v1212 = vpack.c.b16 %v767, %v762
    %v1213 = vpack.c.b16 %v768, %v763
    %v1214 = vpack.c.b16 %v769, %v764
    %v1215 = vpack.c.b16 %v775, %v770
    %v1216 = vpack.c.b16 %v776, %v771
    %v1217 = vpack.c.b16 %v777, %v772
    %v1218 = vpack.c.b16 %v778, %v773
    %v1219 = vpack.c.b16 %v779, %v774
    %v1220 = vpack.c.b16 %v785, %v780
    %v1221 = vpack.c.b16 %v786, %v781
    %v1222 = vpack.c.b16 %v787, %v782
    %v1223 = vpack.c.b16 %v788, %v783
    %v1224 = vpack.c.b16 %v789, %v784
    %v1225 = vpack.c.b16 %v795, %v790
    %v1226 = vpack.c.b16 %v796, %v791
    %v1227 = vpack.c.b16 %v797, %v792
    %v1228 = vpack.c.b16 %v798, %v793
    %v1229 = vpack.c.b16 %v799, %v794
    %v1230 = vpack.c.b16 %v805, %v800
    %v1231 = vpack.c.b16 %v806, %v801
    %v1232 = vpack.c.b16 %v807, %v802
    %v1233 = vpack.c.b16 %v808, %v803
    %v1234 = vpack.c.b16 %v809, %v804
    %v1235 = vpack.c.b16 %v815, %v810
    %v1236 = vpack.c.b16 %v816, %v811
    %v1237 = vpack.c.b16 %v817, %v812
    %v1238 = vpack.c.b16 %v818, %v813
    %v1239 = vpack.c.b16 %v819, %v814
    %v1240 = vpack.c.b16 %v825, %v820
    %v1241 = vpack.c.b16 %v826, %v821
    %v1242 = vpack.c.b16 %v827, %v822
    %v1243 = vpack.c.b16 %v828, %v823
    %v1244 = vpack.c.b16 %v829, %v824
    %v1245 = vpack.c.b16 %v835, %v830
    %v1246 = vpack.c.b16 %v836, %v831
    %v1247 = vpack.c.b16 %v837, %v832
    %v1248 = vpack.c.b16 %v838, %v833
    %v1249 = vpack.c.b16 %v839, %v834
    %v1250 = vpack.c.b16 %v845, %v840
    %v1251 = vpack.c.b16 %v846, %v841
    %v1252 = vpack.c.b16 %v847, %v842
    %v1253 = vpack.c.b16 %v848, %v843
    %v1254 = vpack.c.b16 %v849, %v844
    %v1255 = vpack.c.b16 %v855, %v850
    %v1256 = vpack.c.b16 %v856, %v851
    %v1257 = vpack.c.b16 %v857, %v852
    %v1258 = vpack.c.b16 %v858, %v853
    %v1259 = vpack.c.b16 %v859, %v854
    %v1260 = vpack.c.b16 %v865, %v860
    %v1261 = vpack.c.b16 %v866, %v861
    %v1262 = vpack.c.b16 %v867, %v862
    %v1263 = vpack.c.b16 %v868, %v863
    %v1264 = vpack.c.b16 %v869, %v864
    %v1265 = vpack.c.b16 %v875, %v870
    %v1266 = vpack.c.b16 %v876, %v871
    %v1267 = vpack.c.b16 %v877, %v872
    %v1268 = vpack.c.b16 %v878, %v873
    %v1269 = vpack.c.b16 %v879, %v874
    %v1270 = vpack.c.b16 %v885, %v880
    %v1271 = vpack.c.b16 %v886, %v881
    %v1272 = vpack.c.b16 %v887, %v882
    %v1273 = vpack.c.b16 %v888, %v883
    %v1274 = vpack.c.b16 %v889, %v884
    %v1275 = vpack.c.b16 %v895, %v890
    %v1276 = vpack.c.b16 %v896, %v891
    %v1277 = vpack.c.b16 %v897, %v892
    %v1278 = vpack.c.b16 %v898, %v893
    %v1279 = vpack.c.b16 %v899, %v894
    %v1280 = vpack.c.b16 %v905, %v900
    %v1281 = vpack.c.b16 %v906, %v901
    %v1282 = vpack.c.b16 %v907, %v902
    %v1283 = vpack.c.b16 %v908, %v903
    %v1284 = vpack.c.b16 %v909, %v904
    %v1285 = vpack.c.b16 %v915, %v910
    %v1286 = vpack.c.b16 %v916, %v911
    %v1287 = vpack.c.b16 %v917, %v912
    %v1288 = vpack.c.b16 %v918, %v913
    %v1289 = vpack.c.b16 %v919, %v914
    %v1290 = vpack.c.b16 %v925, %v920
    %v1291 = vpack.c.b16 %v926, %v921
    %v1292 = vpack.c.b16 %v927, %v922
    %v1293 = vpack.c.b16 %v928, %v923
    %v1294 = vpack.c.b16 %v929, %v924
    %v1295 = vpack.c.b16 %v935, %v930
    %v1296 = vpack.c.b16 %v936, %v931
    %v1297 = vpack.c.b16 %v937, %v932
    %v1298 = vpack.c.b16 %v938, %v933
    %v1299 = vpack.c.b16 %v939, %v934
    %v1300 = vpack.c.b16 %v945, %v940
    %v1301 = vpack.c.b16 %v946, %v941
    %v1302 = vpack.c.b16 %v947, %v942
    %v1303 = vpack.c.b16 %v948, %v943
    %v1304 = vpack.c.b16 %v949, %v944
    %v1305 = vpack.c.b16 %v955, %v950
    %v1306 = vpack.c.b16 %v956, %v951
    %v1307 = vpack.c.b16 %v957, %v952
    %v1308 = vpack.c.b16 %v958, %v953
    %v1309 = vpack.c.b16 %v959, %v954
    %v1310 = vpack.c.b16 %v965, %v960
    %v1311 = vpack.c.b16 %v966, %v961
    %v1312 = vpack.c.b16 %v967, %v962
    %v1313 = vpack.c.b16 %v968, %v963
    %v1314 = vpack.c.b16 %v969, %v964
    %v1315 = vpack.c.b16 %v975, %v970
    %v1316 = vpack.c.b16 %v976, %v971
    %v1317 = vpack.c.b16 %v977, %v972
    %v1318 = vpack.c.b16 %v978, %v973
    %v1319 = vpack.c.b16 %v979, %v974
    %v1320 = vpack.c.b16 %v985, %v980
    %v1321 = vpack.c.b16 %v986, %v981
    %v1322 = vpack.c.b16 %v987, %v982
    %v1323 = vpack.c.b16 %v988, %v983
    %v1324 = vpack.c.b16 %v989, %v984
    %v1325 = vpack.c.b16 %v995, %v990
    %v1326 = vpack.c.b16 %v996, %v991
    %v1327 = vpack.c.b16 %v997, %v992
    %v1328 = vpack.c.b16 %v998, %v993
    %v1329 = vpack.c.b16 %v999, %v994
    %v1330 = vpack.c.b16 %v1005, %v1000
    %v1331 = vpack.c.b16 %v1006, %v1001
    %v1332 = vpack.c.b16 %v1007, %v1002
    %v1333 = vpack.c.b16 %v1008, %v1003
    %v1334 = vpack.c.b16 %v1009, %v1004
    %v1335 = vpack.c.b16 %v1015, %v1010
    %v1336 = vpack.c.b16 %v1016, %v1011
    %v1337 = vpack.c.b16 %v1017, %v1012
    %v1338 = vpack.c.b16 %v1018, %v1013
    %v1339 = vpack.c.b16 %v1019, %v1014
    %v1340 = vpack.c.b16 %v1025, %v1020
    %v1341 = vpack.c.b16 %v1026, %v1021
    %v1342 = vpack.c.b16 %v1027, %v1022
    %v1343 = vpack.c.b16 %v1028, %v1023
    %v1344 = vpack.c.b16 %v1029, %v1024
    %v1345 = vpack.c.b16 %v1035, %v1030
    %v1346 = vpack.c.b16 %v1036, %v1031
    %v1347 = vpack.c.b16 %v1037, %v1032
    %v1348 = vpack.c.b16 %v1038, %v1033
    %v1349 = vpack.c.b16 %v1039, %v1034
    %v1350 = vpack.c.b16 %v1045, %v1040
    %v1351 = vpack.c.b16 %v1046, %v1041
    %v1352 = vpack.c.b16 %v1047, %v1042
    %v1353 = vpack.c.b16 %v1048, %v1043
    %v1354 = vpack.c.b16 %v1049, %v1044
    %v1355 = vpack.c.b16 %v1055, %v1050
    %v1356 = vpack.c.b16 %v1056, %v1051
    %v1357 = vpack.c.b16 %v1057, %v1052
    %v1358 = vpack.c.b16 %v1058, %v1053
    %v1359 = vpack.c.b16 %v1059, %v1054
    %v1360 = vpack.c.b16 %v1065, %v1060
    %v1361 = vpack.c.b16 %v1066, %v1061
    %v1362 = vpack.c.b16 %v1067, %v1062
    %v1363 = vpack.c.b16 %v1068, %v1063
    %v1364 = vpack.c.b16 %v1069, %v1064
    %v1365 = vpack.c.b16 %v1075, %v1070
    %v1366 = vpack.c.b16 %v1076, %v1071
    %v1367 = vpack.c.b16 %v1077, %v1072
    %v1368 = vpack.c.b16 %v1078, %v1073
    %v1369 = vpack.c.b16 %v1079, %v1074
    %v1370 = vpack.c.b16 %v1085, %v1080
    %v1371 = vpack.c.b16 %v1086, %v1081
    %v1372 = vpack.c.b16 %v1087, %v1082
    %v1373 = vpack.c.b16 %v1088, %v1083
    %v1374 = vpack.c.b16 %v1089, %v1084
    %v1375 = vpack.c.b16 %v1095, %v1090
    %v1376 = vpack.c.b16 %v1096, %v1091
    %v1377 = vpack.c.b16 %v1097, %v1092
    %v1378 = vpack.c.b16 %v1098, %v1093
    %v1379 = vpack.c.b16 %v1099, %v1094
    %v1380 = vpack.c.b16 %v1105, %v1100
    %v1381 = vpack.c.b16 %v1106, %v1101
    %v1382 = vpack.c.b16 %v1107, %v1102
    %v1383 = vpack.c.b16 %v1108, %v1103
    %v1384 = vpack.c.b16 %v1109, %v1104
    %v1385 = vpack.c.b16 %v1115, %v1110
    %v1386 = vpack.c.b16 %v1116, %v1111
    %v1387 = vpack.c.b16 %v1117, %v1112
    %v1388 = vpack.c.b16 %v1118, %v1113
    %v1389 = vpack.c.b16 %v1119, %v1114
    %v1390 = vpack.c.b16 %v1125, %v1120
    %v1391 = vpack.c.b16 %v1126, %v1121
    %v1392 = vpack.c.b16 %v1127, %v1122
    %v1393 = vpack.c.b16 %v1128, %v1123
    %v1394 = vpack.c.b16 %v1129, %v1124
    %v1395 = vpack.c.b16 %v1135, %v1130
    %v1396 = vpack.c.b16 %v1136, %v1131
    %v1397 = vpack.c.b16 %v1137, %v1132
    %v1398 = vpack.c.b16 %v1138, %v1133
    %v1399 = vpack.c.b16 %v1139, %v1134
    %v1400 = vpack.c.b16 %v1145, %v1140
    %v1401 = vpack.c.b16 %v1146, %v1141
    %v1402 = vpack.c.b16 %v1147, %v1142
    %v1403 = vpack.c.b16 %v1148, %v1143
    %v1404 = vpack.c.b16 %v1149, %v1144
    %v1405 = vpack.c.b16 %v1155, %v1150
    %v1406 = vpack.c.b16 %v1156, %v1151
    %v1407 = vpack.c.b16 %v1157, %v1152
    %v1408 = vpack.c.b16 %v1158, %v1153
    %v1409 = vpack.c.b16 %v1159, %v1154
    %v1410 = vpack.c.b16 %v1165, %v1160
    %v1411 = vpack.c.b16 %v1166, %v1161
    %v1412 = vpack.c.b16 %v1167, %v1162
    %v1413 = vpack.c.b16 %v1168, %v1163
    %v1414 = vpack.c.b16 %v1169, %v1164
    %vm1660 = vcmask 130048
    %v1662 = vsel %vm1660, %v79, 0
    %1664 = vmatpush.bf16.msra.mxu0 %v1205
    %1665 = vmatpush.bf16.msra.mxu0 %v1200
    %1666 = vmatpush.bf16.msra.mxu0 %v1195
    %1667 = vmatpush.bf16.msra.mxu0 %v1190
    %1668 = vmatpush.bf16.msra.mxu0 %v1185
    %1669 = vmatpush.bf16.msra.mxu0 %v1180
    %1670 = vmatpush.bf16.msra.mxu0 %v1175
    %1671 = vmatpush.bf16.msra.mxu0 %v1170
    %1672 = vmatmul.bf16.gmra.mxu0 %v73
    %v1673 = vpop.f32.mrf.mxu0
    %v1674 = vadd.f32 %v376, %v1673
    %v1675 = vpop.f32.mrf.mxu0
    %1676 = vdwg.mxu0
    %1677 = vmatpush.bf16.msra.mxu0 %v1245
    %1678 = vmatpush.bf16.msra.mxu0 %v1240
    %1679 = vmatpush.bf16.msra.mxu0 %v1235
    %1680 = vmatpush.bf16.msra.mxu0 %v1230
    %1681 = vmatpush.bf16.msra.mxu0 %v1225
    %1682 = vmatpush.bf16.msra.mxu0 %v1220
    %1683 = vmatpush.bf16.msra.mxu0 %v1215
    %1684 = vmatpush.bf16.msra.mxu0 %v1210
    %1685 = vmatmul.bf16.gmra.mxu0 %v74
    %v1686 = vpop.f32.mrf.mxu0
    %v1687 = vadd.f32 %v1674, %v1686
    %v1688 = vpop.f32.mrf.mxu0
    %1689 = vdwg.mxu0
    %1690 = vmatpush.bf16.msra.mxu0 %v1285
    %1691 = vmatpush.bf16.msra.mxu0 %v1280
    %1692 = vmatpush.bf16.msra.mxu0 %v1275
    %1693 = vmatpush.bf16.msra.mxu0 %v1270
    %1694 = vmatpush.bf16.msra.mxu0 %v1265
    %1695 = vmatpush.bf16.msra.mxu0 %v1260
    %1696 = vmatpush.bf16.msra.mxu0 %v1255
    %1697 = vmatpush.bf16.msra.mxu0 %v1250
    %1698 = vmatmul.bf16.gmra.mxu0 %v75
    %v1699 = vpop.f32.mrf.mxu0
    %v1700 = vadd.f32 %v1687, %v1699
    %v1701 = vpop.f32.mrf.mxu0
    %1702 = vdwg.mxu0
    %1703 = vmatpush.bf16.msra.mxu0 %v1325
    %1704 = vmatpush.bf16.msra.mxu0 %v1320
    %1705 = vmatpush.bf16.msra.mxu0 %v1315
    %1706 = vmatpush.bf16.msra.mxu0 %v1310
    %1707 = vmatpush.bf16.msra.mxu0 %v1305
    %1708 = vmatpush.bf16.msra.mxu0 %v1300
    %1709 = vmatpush.bf16.msra.mxu0 %v1295
    %1710 = vmatpush.bf16.msra.mxu0 %v1290
    %1711 = vmatmul.bf16.gmra.mxu0 %v76
    %v1712 = vpop.f32.mrf.mxu0
    %v1713 = vadd.f32 %v1700, %v1712
    %v1714 = vpop.f32.mrf.mxu0
    %1715 = vdwg.mxu0
    %1716 = vmatpush.bf16.msra.mxu0 %v1365
    %1717 = vmatpush.bf16.msra.mxu0 %v1360
    %1718 = vmatpush.bf16.msra.mxu0 %v1355
    %1719 = vmatpush.bf16.msra.mxu0 %v1350
    %1720 = vmatpush.bf16.msra.mxu0 %v1345
    %1721 = vmatpush.bf16.msra.mxu0 %v1340
    %1722 = vmatpush.bf16.msra.mxu0 %v1335
    %1723 = vmatpush.bf16.msra.mxu0 %v1330
    %1724 = vmatmul.bf16.gmra.mxu0 %v77
    %v1725 = vpop.f32.mrf.mxu0
    %v1726 = vadd.f32 %v1713, %v1725
    %v1727 = vpop.f32.mrf.mxu0
    %1728 = vdwg.mxu0
    %1729 = vmatpush.bf16.msra.mxu0 %v1405
    %1730 = vmatpush.bf16.msra.mxu0 %v1400
    %1731 = vmatpush.bf16.msra.mxu0 %v1395
    %1732 = vmatpush.bf16.msra.mxu0 %v1390
    %1733 = vmatpush.bf16.msra.mxu0 %v1385
    %1734 = vmatpush.bf16.msra.mxu0 %v1380
    %1735 = vmatpush.bf16.msra.mxu0 %v1375
    %1736 = vmatpush.bf16.msra.mxu0 %v1370
    %1737 = vmatmul.bf16.gmra.mxu0 %v78
    %v1738 = vpop.f32.mrf.mxu0
    %v1739 = vadd.f32 %v1726, %v1738
    %v1740 = vpop.f32.mrf.mxu0
    %1741 = vdwg.mxu0
    %1742 = vmatpush.bf16.msra.mxu0 0
    %1743 = vmatpush.bf16.msra.mxu0 0
    %1744 = vmatpush.bf16.msra.mxu0 0
    %1745 = vmatpush.bf16.msra.mxu0 0
    %1746 = vmatpush.bf16.msra.mxu0 0
    %1747 = vmatpush.bf16.msra.mxu0 0
    %1748 = vmatpush.bf16.msra.mxu0 0
    %1749 = vmatpush.bf16.msra.mxu0 %v1410
    %1750 = vmatmul.bf16.gmra.mxu0 %v1662
    %v1751 = vpop.f32.mrf.mxu0
    %v1752 = vadd.f32 %v1739, %v1751
    %v1753 = vpop.f32.mrf.mxu0
    %1754 = vdwg.mxu0
    %1755 = vmatpush.bf16.msra.mxu0 %v1206
    %1756 = vmatpush.bf16.msra.mxu0 %v1201
    %1757 = vmatpush.bf16.msra.mxu0 %v1196
    %1758 = vmatpush.bf16.msra.mxu0 %v1191
    %1759 = vmatpush.bf16.msra.mxu0 %v1186
    %1760 = vmatpush.bf16.msra.mxu0 %v1181
    %1761 = vmatpush.bf16.msra.mxu0 %v1176
    %1762 = vmatpush.bf16.msra.mxu0 %v1171
    %1763 = vmatmul.bf16.gmra.mxu0 %v73
    %v1764 = vpop.f32.mrf.mxu0
    %v1765 = vadd.f32 %v377, %v1764
    %v1766 = vpop.f32.mrf.mxu0
    %1767 = vdwg.mxu0
    %1768 = vmatpush.bf16.msra.mxu0 %v1246
    %1769 = vmatpush.bf16.msra.mxu0 %v1241
    %1770 = vmatpush.bf16.msra.mxu0 %v1236
    %1771 = vmatpush.bf16.msra.mxu0 %v1231
    %1772 = vmatpush.bf16.msra.mxu0 %v1226
    %1773 = vmatpush.bf16.msra.mxu0 %v1221
    %1774 = vmatpush.bf16.msra.mxu0 %v1216
    %1775 = vmatpush.bf16.msra.mxu0 %v1211
    %1776 = vmatmul.bf16.gmra.mxu0 %v74
    %v1777 = vpop.f32.mrf.mxu0
    %v1778 = vadd.f32 %v1765, %v1777
    %v1779 = vpop.f32.mrf.mxu0
    %1780 = vdwg.mxu0
    %1781 = vmatpush.bf16.msra.mxu0 %v1286
    %1782 = vmatpush.bf16.msra.mxu0 %v1281
    %1783 = vmatpush.bf16.msra.mxu0 %v1276
    %1784 = vmatpush.bf16.msra.mxu0 %v1271
    %1785 = vmatpush.bf16.msra.mxu0 %v1266
    %1786 = vmatpush.bf16.msra.mxu0 %v1261
    %1787 = vmatpush.bf16.msra.mxu0 %v1256
    %1788 = vmatpush.bf16.msra.mxu0 %v1251
    %1789 = vmatmul.bf16.gmra.mxu0 %v75
    %v1790 = vpop.f32.mrf.mxu0
    %v1791 = vadd.f32 %v1778, %v1790
    %v1792 = vpop.f32.mrf.mxu0
    %1793 = vdwg.mxu0
    %1794 = vmatpush.bf16.msra.mxu0 %v1326
    %1795 = vmatpush.bf16.msra.mxu0 %v1321
    %1796 = vmatpush.bf16.msra.mxu0 %v1316
    %1797 = vmatpush.bf16.msra.mxu0 %v1311
    %1798 = vmatpush.bf16.msra.mxu0 %v1306
    %1799 = vmatpush.bf16.msra.mxu0 %v1301
    %1800 = vmatpush.bf16.msra.mxu0 %v1296
    %1801 = vmatpush.bf16.msra.mxu0 %v1291
    %1802 = vmatmul.bf16.gmra.mxu0 %v76
    %v1803 = vpop.f32.mrf.mxu0
    %v1804 = vadd.f32 %v1791, %v1803
    %v1805 = vpop.f32.mrf.mxu0
    %1806 = vdwg.mxu0
    %1807 = vmatpush.bf16.msra.mxu0 %v1366
    %1808 = vmatpush.bf16.msra.mxu0 %v1361
    %1809 = vmatpush.bf16.msra.mxu0 %v1356
    %1810 = vmatpush.bf16.msra.mxu0 %v1351
    %1811 = vmatpush.bf16.msra.mxu0 %v1346
    %1812 = vmatpush.bf16.msra.mxu0 %v1341
    %1813 = vmatpush.bf16.msra.mxu0 %v1336
    %1814 = vmatpush.bf16.msra.mxu0 %v1331
    %1815 = vmatmul.bf16.gmra.mxu0 %v77
    %v1816 = vpop.f32.mrf.mxu0
    %v1817 = vadd.f32 %v1804, %v1816
    %v1818 = vpop.f32.mrf.mxu0
    %1819 = vdwg.mxu0
    %1820 = vmatpush.bf16.msra.mxu0 %v1406
    %1821 = vmatpush.bf16.msra.mxu0 %v1401
    %1822 = vmatpush.bf16.msra.mxu0 %v1396
    %1823 = vmatpush.bf16.msra.mxu0 %v1391
    %1824 = vmatpush.bf16.msra.mxu0 %v1386
    %1825 = vmatpush.bf16.msra.mxu0 %v1381
    %1826 = vmatpush.bf16.msra.mxu0 %v1376
    %1827 = vmatpush.bf16.msra.mxu0 %v1371
    %1828 = vmatmul.bf16.gmra.mxu0 %v78
    %v1829 = vpop.f32.mrf.mxu0
    %v1830 = vadd.f32 %v1817, %v1829
    %v1831 = vpop.f32.mrf.mxu0
    %1832 = vdwg.mxu0
    %1833 = vmatpush.bf16.msra.mxu0 0
    %1834 = vmatpush.bf16.msra.mxu0 0
    %1835 = vmatpush.bf16.msra.mxu0 0
    %1836 = vmatpush.bf16.msra.mxu0 0
    %1837 = vmatpush.bf16.msra.mxu0 0
    %1838 = vmatpush.bf16.msra.mxu0 0
    %1839 = vmatpush.bf16.msra.mxu0 0
    %1840 = vmatpush.bf16.msra.mxu0 %v1411
    %1841 = vmatmul.bf16.gmra.mxu0 %v1662
    %v1842 = vpop.f32.mrf.mxu0
    %v1843 = vadd.f32 %v1830, %v1842
    %v1844 = vpop.f32.mrf.mxu0
    %1845 = vdwg.mxu0
    %1846 = vmatpush.bf16.msra.mxu0 %v1207
    %1847 = vmatpush.bf16.msra.mxu0 %v1202
    %1848 = vmatpush.bf16.msra.mxu0 %v1197
    %1849 = vmatpush.bf16.msra.mxu0 %v1192
    %1850 = vmatpush.bf16.msra.mxu0 %v1187
    %1851 = vmatpush.bf16.msra.mxu0 %v1182
    %1852 = vmatpush.bf16.msra.mxu0 %v1177
    %1853 = vmatpush.bf16.msra.mxu0 %v1172
    %1854 = vmatmul.bf16.gmra.mxu0 %v73
    %v1855 = vpop.f32.mrf.mxu0
    %v1856 = vadd.f32 %v378, %v1855
    %v1857 = vpop.f32.mrf.mxu0
    %1858 = vdwg.mxu0
    %1859 = vmatpush.bf16.msra.mxu0 %v1247
    %1860 = vmatpush.bf16.msra.mxu0 %v1242
    %1861 = vmatpush.bf16.msra.mxu0 %v1237
    %1862 = vmatpush.bf16.msra.mxu0 %v1232
    %1863 = vmatpush.bf16.msra.mxu0 %v1227
    %1864 = vmatpush.bf16.msra.mxu0 %v1222
    %1865 = vmatpush.bf16.msra.mxu0 %v1217
    %1866 = vmatpush.bf16.msra.mxu0 %v1212
    %1867 = vmatmul.bf16.gmra.mxu0 %v74
    %v1868 = vpop.f32.mrf.mxu0
    %v1869 = vadd.f32 %v1856, %v1868
    %v1870 = vpop.f32.mrf.mxu0
    %1871 = vdwg.mxu0
    %1872 = vmatpush.bf16.msra.mxu0 %v1287
    %1873 = vmatpush.bf16.msra.mxu0 %v1282
    %1874 = vmatpush.bf16.msra.mxu0 %v1277
    %1875 = vmatpush.bf16.msra.mxu0 %v1272
    %1876 = vmatpush.bf16.msra.mxu0 %v1267
    %1877 = vmatpush.bf16.msra.mxu0 %v1262
    %1878 = vmatpush.bf16.msra.mxu0 %v1257
    %1879 = vmatpush.bf16.msra.mxu0 %v1252
    %1880 = vmatmul.bf16.gmra.mxu0 %v75
    %v1881 = vpop.f32.mrf.mxu0
    %v1882 = vadd.f32 %v1869, %v1881
    %v1883 = vpop.f32.mrf.mxu0
    %1884 = vdwg.mxu0
    %1885 = vmatpush.bf16.msra.mxu0 %v1327
    %1886 = vmatpush.bf16.msra.mxu0 %v1322
    %1887 = vmatpush.bf16.msra.mxu0 %v1317
    %1888 = vmatpush.bf16.msra.mxu0 %v1312
    %1889 = vmatpush.bf16.msra.mxu0 %v1307
    %1890 = vmatpush.bf16.msra.mxu0 %v1302
    %1891 = vmatpush.bf16.msra.mxu0 %v1297
    %1892 = vmatpush.bf16.msra.mxu0 %v1292
    %1893 = vmatmul.bf16.gmra.mxu0 %v76
    %v1894 = vpop.f32.mrf.mxu0
    %v1895 = vadd.f32 %v1882, %v1894
    %v1896 = vpop.f32.mrf.mxu0
    %1897 = vdwg.mxu0
    %1898 = vmatpush.bf16.msra.mxu0 %v1367
    %1899 = vmatpush.bf16.msra.mxu0 %v1362
    %1900 = vmatpush.bf16.msra.mxu0 %v1357
    %1901 = vmatpush.bf16.msra.mxu0 %v1352
    %1902 = vmatpush.bf16.msra.mxu0 %v1347
    %1903 = vmatpush.bf16.msra.mxu0 %v1342
    %1904 = vmatpush.bf16.msra.mxu0 %v1337
    %1905 = vmatpush.bf16.msra.mxu0 %v1332
    %1906 = vmatmul.bf16.gmra.mxu0 %v77
    %v1907 = vpop.f32.mrf.mxu0
    %v1908 = vadd.f32 %v1895, %v1907
    %v1909 = vpop.f32.mrf.mxu0
    %1910 = vdwg.mxu0
    %1911 = vmatpush.bf16.msra.mxu0 %v1407
    %1912 = vmatpush.bf16.msra.mxu0 %v1402
    %1913 = vmatpush.bf16.msra.mxu0 %v1397
    %1914 = vmatpush.bf16.msra.mxu0 %v1392
    %1915 = vmatpush.bf16.msra.mxu0 %v1387
    %1916 = vmatpush.bf16.msra.mxu0 %v1382
    %1917 = vmatpush.bf16.msra.mxu0 %v1377
    %1918 = vmatpush.bf16.msra.mxu0 %v1372
    %1919 = vmatmul.bf16.gmra.mxu0 %v78
    %v1920 = vpop.f32.mrf.mxu0
    %v1921 = vadd.f32 %v1908, %v1920
    %v1922 = vpop.f32.mrf.mxu0
    %1923 = vdwg.mxu0
    %1924 = vmatpush.bf16.msra.mxu0 0
    %1925 = vmatpush.bf16.msra.mxu0 0
    %1926 = vmatpush.bf16.msra.mxu0 0
    %1927 = vmatpush.bf16.msra.mxu0 0
    %1928 = vmatpush.bf16.msra.mxu0 0
    %1929 = vmatpush.bf16.msra.mxu0 0
    %1930 = vmatpush.bf16.msra.mxu0 0
    %1931 = vmatpush.bf16.msra.mxu0 %v1412
    %1932 = vmatmul.bf16.gmra.mxu0 %v1662
    %v1933 = vpop.f32.mrf.mxu0
    %v1934 = vadd.f32 %v1921, %v1933
    %v1935 = vpop.f32.mrf.mxu0
    %1936 = vdwg.mxu0
    %1937 = vmatpush.bf16.msra.mxu0 %v1208
    %1938 = vmatpush.bf16.msra.mxu0 %v1203
    %1939 = vmatpush.bf16.msra.mxu0 %v1198
    %1940 = vmatpush.bf16.msra.mxu0 %v1193
    %1941 = vmatpush.bf16.msra.mxu0 %v1188
    %1942 = vmatpush.bf16.msra.mxu0 %v1183
    %1943 = vmatpush.bf16.msra.mxu0 %v1178
    %1944 = vmatpush.bf16.msra.mxu0 %v1173
    %1945 = vmatmul.bf16.gmra.mxu0 %v73
    %v1946 = vpop.f32.mrf.mxu0
    %v1947 = vadd.f32 %v379, %v1946
    %v1948 = vpop.f32.mrf.mxu0
    %1949 = vdwg.mxu0
    %1950 = vmatpush.bf16.msra.mxu0 %v1248
    %1951 = vmatpush.bf16.msra.mxu0 %v1243
    %1952 = vmatpush.bf16.msra.mxu0 %v1238
    %1953 = vmatpush.bf16.msra.mxu0 %v1233
    %1954 = vmatpush.bf16.msra.mxu0 %v1228
    %1955 = vmatpush.bf16.msra.mxu0 %v1223
    %1956 = vmatpush.bf16.msra.mxu0 %v1218
    %1957 = vmatpush.bf16.msra.mxu0 %v1213
    %1958 = vmatmul.bf16.gmra.mxu0 %v74
    %v1959 = vpop.f32.mrf.mxu0
    %v1960 = vadd.f32 %v1947, %v1959
    %v1961 = vpop.f32.mrf.mxu0
    %1962 = vdwg.mxu0
    %1963 = vmatpush.bf16.msra.mxu0 %v1288
    %1964 = vmatpush.bf16.msra.mxu0 %v1283
    %1965 = vmatpush.bf16.msra.mxu0 %v1278
    %1966 = vmatpush.bf16.msra.mxu0 %v1273
    %1967 = vmatpush.bf16.msra.mxu0 %v1268
    %1968 = vmatpush.bf16.msra.mxu0 %v1263
    %1969 = vmatpush.bf16.msra.mxu0 %v1258
    %1970 = vmatpush.bf16.msra.mxu0 %v1253
    %1971 = vmatmul.bf16.gmra.mxu0 %v75
    %v1972 = vpop.f32.mrf.mxu0
    %v1973 = vadd.f32 %v1960, %v1972
    %v1974 = vpop.f32.mrf.mxu0
    %1975 = vdwg.mxu0
    %1976 = vmatpush.bf16.msra.mxu0 %v1328
    %1977 = vmatpush.bf16.msra.mxu0 %v1323
    %1978 = vmatpush.bf16.msra.mxu0 %v1318
    %1979 = vmatpush.bf16.msra.mxu0 %v1313
    %1980 = vmatpush.bf16.msra.mxu0 %v1308
    %1981 = vmatpush.bf16.msra.mxu0 %v1303
    %1982 = vmatpush.bf16.msra.mxu0 %v1298
    %1983 = vmatpush.bf16.msra.mxu0 %v1293
    %1984 = vmatmul.bf16.gmra.mxu0 %v76
    %v1985 = vpop.f32.mrf.mxu0
    %v1986 = vadd.f32 %v1973, %v1985
    %v1987 = vpop.f32.mrf.mxu0
    %1988 = vdwg.mxu0
    %1989 = vmatpush.bf16.msra.mxu0 %v1368
    %1990 = vmatpush.bf16.msra.mxu0 %v1363
    %1991 = vmatpush.bf16.msra.mxu0 %v1358
    %1992 = vmatpush.bf16.msra.mxu0 %v1353
    %1993 = vmatpush.bf16.msra.mxu0 %v1348
    %1994 = vmatpush.bf16.msra.mxu0 %v1343
    %1995 = vmatpush.bf16.msra.mxu0 %v1338
    %1996 = vmatpush.bf16.msra.mxu0 %v1333
    %1997 = vmatmul.bf16.gmra.mxu0 %v77
    %v1998 = vpop.f32.mrf.mxu0
    %v1999 = vadd.f32 %v1986, %v1998
    %v2000 = vpop.f32.mrf.mxu0
    %2001 = vdwg.mxu0
    %2002 = vmatpush.bf16.msra.mxu0 %v1408
    %2003 = vmatpush.bf16.msra.mxu0 %v1403
    %2004 = vmatpush.bf16.msra.mxu0 %v1398
    %2005 = vmatpush.bf16.msra.mxu0 %v1393
    %2006 = vmatpush.bf16.msra.mxu0 %v1388
    %2007 = vmatpush.bf16.msra.mxu0 %v1383
    %2008 = vmatpush.bf16.msra.mxu0 %v1378
    %2009 = vmatpush.bf16.msra.mxu0 %v1373
    %2010 = vmatmul.bf16.gmra.mxu0 %v78
    %v2011 = vpop.f32.mrf.mxu0
    %v2012 = vadd.f32 %v1999, %v2011
    %v2013 = vpop.f32.mrf.mxu0
    %2014 = vdwg.mxu0
    %2015 = vmatpush.bf16.msra.mxu0 0
    %2016 = vmatpush.bf16.msra.mxu0 0
    %2017 = vmatpush.bf16.msra.mxu0 0
    %2018 = vmatpush.bf16.msra.mxu0 0
    %2019 = vmatpush.bf16.msra.mxu0 0
    %2020 = vmatpush.bf16.msra.mxu0 0
    %2021 = vmatpush.bf16.msra.mxu0 0
    %2022 = vmatpush.bf16.msra.mxu0 %v1413
    %2023 = vmatmul.bf16.gmra.mxu0 %v1662
    %v2024 = vpop.f32.mrf.mxu0
    %v2025 = vadd.f32 %v2012, %v2024
    %v2026 = vpop.f32.mrf.mxu0
    %2027 = vdwg.mxu0
    %2028 = vmatpush.bf16.msra.mxu0 %v1209
    %2029 = vmatpush.bf16.msra.mxu0 %v1204
    %2030 = vmatpush.bf16.msra.mxu0 %v1199
    %2031 = vmatpush.bf16.msra.mxu0 %v1194
    %2032 = vmatpush.bf16.msra.mxu0 %v1189
    %2033 = vmatpush.bf16.msra.mxu0 %v1184
    %2034 = vmatpush.bf16.msra.mxu0 %v1179
    %2035 = vmatpush.bf16.msra.mxu0 %v1174
    %2036 = vmatmul.bf16.gmra.mxu0 %v73
    %v2037 = vpop.f32.mrf.mxu0
    %v2038 = vadd.f32 %v380, %v2037
    %v2039 = vpop.f32.mrf.mxu0
    %2040 = vdwg.mxu0
    %2041 = vmatpush.bf16.msra.mxu0 %v1249
    %2042 = vmatpush.bf16.msra.mxu0 %v1244
    %2043 = vmatpush.bf16.msra.mxu0 %v1239
    %2044 = vmatpush.bf16.msra.mxu0 %v1234
    %2045 = vmatpush.bf16.msra.mxu0 %v1229
    %2046 = vmatpush.bf16.msra.mxu0 %v1224
    %2047 = vmatpush.bf16.msra.mxu0 %v1219
    %2048 = vmatpush.bf16.msra.mxu0 %v1214
    %2049 = vmatmul.bf16.gmra.mxu0 %v74
    %v2050 = vpop.f32.mrf.mxu0
    %v2051 = vadd.f32 %v2038, %v2050
    %v2052 = vpop.f32.mrf.mxu0
    %2053 = vdwg.mxu0
    %2054 = vmatpush.bf16.msra.mxu0 %v1289
    %2055 = vmatpush.bf16.msra.mxu0 %v1284
    %2056 = vmatpush.bf16.msra.mxu0 %v1279
    %2057 = vmatpush.bf16.msra.mxu0 %v1274
    %2058 = vmatpush.bf16.msra.mxu0 %v1269
    %2059 = vmatpush.bf16.msra.mxu0 %v1264
    %2060 = vmatpush.bf16.msra.mxu0 %v1259
    %2061 = vmatpush.bf16.msra.mxu0 %v1254
    %2062 = vmatmul.bf16.gmra.mxu0 %v75
    %v2063 = vpop.f32.mrf.mxu0
    %v2064 = vadd.f32 %v2051, %v2063
    %v2065 = vpop.f32.mrf.mxu0
    %2066 = vdwg.mxu0
    %2067 = vmatpush.bf16.msra.mxu0 %v1329
    %2068 = vmatpush.bf16.msra.mxu0 %v1324
    %2069 = vmatpush.bf16.msra.mxu0 %v1319
    %2070 = vmatpush.bf16.msra.mxu0 %v1314
    %2071 = vmatpush.bf16.msra.mxu0 %v1309
    %2072 = vmatpush.bf16.msra.mxu0 %v1304
    %2073 = vmatpush.bf16.msra.mxu0 %v1299
    %2074 = vmatpush.bf16.msra.mxu0 %v1294
    %2075 = vmatmul.bf16.gmra.mxu0 %v76
    %v2076 = vpop.f32.mrf.mxu0
    %v2077 = vadd.f32 %v2064, %v2076
    %v2078 = vpop.f32.mrf.mxu0
    %2079 = vdwg.mxu0
    %2080 = vmatpush.bf16.msra.mxu0 %v1369
    %2081 = vmatpush.bf16.msra.mxu0 %v1364
    %2082 = vmatpush.bf16.msra.mxu0 %v1359
    %2083 = vmatpush.bf16.msra.mxu0 %v1354
    %2084 = vmatpush.bf16.msra.mxu0 %v1349
    %2085 = vmatpush.bf16.msra.mxu0 %v1344
    %2086 = vmatpush.bf16.msra.mxu0 %v1339
    %2087 = vmatpush.bf16.msra.mxu0 %v1334
    %2088 = vmatmul.bf16.gmra.mxu0 %v77
    %v2089 = vpop.f32.mrf.mxu0
    %v2090 = vadd.f32 %v2077, %v2089
    %v2091 = vpop.f32.mrf.mxu0
    %2092 = vdwg.mxu0
    %2093 = vmatpush.bf16.msra.mxu0 %v1409
    %2094 = vmatpush.bf16.msra.mxu0 %v1404
    %2095 = vmatpush.bf16.msra.mxu0 %v1399
    %2096 = vmatpush.bf16.msra.mxu0 %v1394
    %2097 = vmatpush.bf16.msra.mxu0 %v1389
    %2098 = vmatpush.bf16.msra.mxu0 %v1384
    %2099 = vmatpush.bf16.msra.mxu0 %v1379
    %2100 = vmatpush.bf16.msra.mxu0 %v1374
    %2101 = vmatmul.bf16.gmra.mxu0 %v78
    %v2102 = vpop.f32.mrf.mxu0
    %v2103 = vadd.f32 %v2090, %v2102
    %v2104 = vpop.f32.mrf.mxu0
    %2105 = vdwg.mxu0
    %2106 = vmatpush.bf16.msra.mxu0 0
    %2107 = vmatpush.bf16.msra.mxu0 0
    %2108 = vmatpush.bf16.msra.mxu0 0
    %2109 = vmatpush.bf16.msra.mxu0 0
    %2110 = vmatpush.bf16.msra.mxu0 0
    %2111 = vmatpush.bf16.msra.mxu0 0
    %2112 = vmatpush.bf16.msra.mxu0 0
    %2113 = vmatpush.bf16.msra.mxu0 %v1414
    %2114 = vmatmul.bf16.gmra.mxu0 %v1662
    %v2115 = vpop.f32.mrf.mxu0
    %v2116 = vadd.f32 %v2103, %v2115
    %v2117 = vpop.f32.mrf.mxu0
    %2118 = vdwg.mxu0
    %v2119 = vmax.f32 %v1752, 0.0
    %v2120 = vmax.f32 %v1843, 0.0
    %v2121 = vmax.f32 %v1934, 0.0
    %v2122 = vmax.f32 %v2025, 0.0
    %v2123 = vmax.f32 %v2116, 0.0
    %v2124 = vpack.c.bf16 %v2119, %v2119
    %v2125 = vpack.c.bf16 %v2120, %v2120
    %v2126 = vpack.c.bf16 %v2121, %v2121
    %v2127 = vpack.c.bf16 %v2122, %v2122
    %v2128 = vpack.c.bf16 %v2123, %v2123
    %v2129 = vld [vmem:[%s2] sm:$0xff]
    %v2130 = vld [vmem:[%s2 + $0x8] sm:$0xf]
    %v2131 = vld [vmem:[%s2 + $0xc] sm:$0xff]
    %v2132 = vld [vmem:[%s2 + $0x14] sm:$0xf]
    %v2133 = vld [vmem:[%s2 + $0x18] sm:$0xff]
    %v2134 = vld [vmem:[%s2 + $0x20] sm:$0xf]
    %v2135 = vld [vmem:[%s2 + $0x24] sm:$0xff]
    %v2136 = vld [vmem:[%s2 + $0x2c] sm:$0xf]
    %v2137 = vld [vmem:[%s2 + $0x30] sm:$0xff]
    %v2138 = vld [vmem:[%s2 + $0x38] sm:$0xf]
    %v2139 = vld [vmem:[%s2 + $0x3c] sm:$0xff]
    %v2140 = vld [vmem:[%s2 + $0x44] sm:$0xf]
    %v2141 = vld [vmem:[%s2 + $0x48] sm:$0xff]
    %v2142 = vld [vmem:[%s2 + $0x50] sm:$0xf]
    %v2143 = vld [vmem:[%s2 + $0x54] sm:$0xff]
    %v2144 = vld [vmem:[%s2 + $0x5c] sm:$0xf]
    %v2145 = vld [vmem:[%s2 + $0x60] sm:$0xff]
    %v2146 = vld [vmem:[%s2 + $0x68] sm:$0xf]
    %v2147 = vld [vmem:[%s2 + $0x6c] sm:$0xff]
    %v2148 = vld [vmem:[%s2 + $0x74] sm:$0xf]
    %v2149 = vld [vmem:[%s2 + $0x78] sm:$0xff]
    %v2150 = vld [vmem:[%s2 + $0x80] sm:$0xf]
    %v2151 = vld [vmem:[%s2 + $0x84] sm:$0xff]
    %v2152 = vld [vmem:[%s2 + $0x8c] sm:$0xf]
    %v2153 = vld [vmem:[%s2 + $0x90] sm:$0xff]
    %v2154 = vld [vmem:[%s2 + $0x98] sm:$0xf]
    %v2155 = vld [vmem:[%s2 + $0x9c] sm:$0xff]
    %v2156 = vld [vmem:[%s2 + $0xa4] sm:$0xf]
    %v2157 = vld [vmem:[%s2 + $0xa8] sm:$0xff]
    %v2158 = vld [vmem:[%s2 + $0xb0] sm:$0xf]
    %v2159 = vld [vmem:[%s2 + $0xb4] sm:$0xff]
    %v2160 = vld [vmem:[%s2 + $0xbc] sm:$0xf]
    %v2161 = vld [vmem:[%s2 + $0xc0] sm:$0xff]
    %v2162 = vld [vmem:[%s2 + $0xc8] sm:$0xf]
    %v2163 = vld [vmem:[%s2 + $0xcc] sm:$0xff]
    %v2164 = vld [vmem:[%s2 + $0xd4] sm:$0xf]
    %v2165 = vld [vmem:[%s2 + $0xd8] sm:$0xff]
    %v2166 = vld [vmem:[%s2 + $0xe0] sm:$0xf]
    %v2167 = vld [vmem:[%s2 + $0xe4] sm:$0xff]
    %v2168 = vld [vmem:[%s2 + $0xec] sm:$0xf]
    %v2169 = vld [vmem:[%s2 + $0xf0] sm:$0xff]
    %v2170 = vld [vmem:[%s2 + $0xf8] sm:$0xf]
    %v2171 = vld [vmem:[%s2 + $0xfc] sm:$0xff]
    %v2172 = vld [vmem:[%s2 + $0x104] sm:$0xf]
    %v2173 = vld [vmem:[%s2 + $0x108] sm:$0xff]
    %v2174 = vld [vmem:[%s2 + $0x110] sm:$0xf]
    %v2175 = vld [vmem:[%s2 + $0x114] sm:$0xff]
    %v2176 = vld [vmem:[%s2 + $0x11c] sm:$0xf]
    %v2177 = vld [vmem:[%s2 + $0x120] sm:$0xff]
    %v2178 = vld [vmem:[%s2 + $0x128] sm:$0xf]
    %v2179 = vld [vmem:[%s2 + $0x12c] sm:$0xff]
    %v2180 = vld [vmem:[%s2 + $0x134] sm:$0xf]
    %v2181 = vld [vmem:[%s2 + $0x138] sm:$0xff]
    %v2182 = vld [vmem:[%s2 + $0x140] sm:$0xf]
    %v2183 = vld [vmem:[%s2 + $0x144] sm:$0xff]
    %v2184 = vld [vmem:[%s2 + $0x14c] sm:$0xf]
    %v2185 = vld [vmem:[%s2 + $0x150] sm:$0xff]
    %v2186 = vld [vmem:[%s2 + $0x158] sm:$0xf]
    %v2187 = vld [vmem:[%s2 + $0x15c] sm:$0xff]
    %v2188 = vld [vmem:[%s2 + $0x164] sm:$0xf]
    %v2189 = vld [vmem:[%s2 + $0x168] sm:$0xff]
    %v2190 = vld [vmem:[%s2 + $0x170] sm:$0xf]
    %v2191 = vld [vmem:[%s2 + $0x174] sm:$0xff]
    %v2192 = vld [vmem:[%s2 + $0x17c] sm:$0xf]
    %v2193 = vld [vmem:[%s2 + $0x180] sm:$0xff]
    %v2194 = vld [vmem:[%s2 + $0x188] sm:$0xf]
    %v2195 = vld [vmem:[%s2 + $0x18c] sm:$0xff]
    %v2196 = vld [vmem:[%s2 + $0x194] sm:$0xf]
    %v2197 = vld [vmem:[%s2 + $0x198] sm:$0xff]
    %v2198 = vld [vmem:[%s2 + $0x1a0] sm:$0xf]
    %v2199 = vld [vmem:[%s2 + $0x1a4] sm:$0xff]
    %v2200 = vld [vmem:[%s2 + $0x1ac] sm:$0xf]
    %v2201 = vld [vmem:[%s2 + $0x1b0] sm:$0xff]
    %v2202 = vld [vmem:[%s2 + $0x1b8] sm:$0xf]
    %v2203 = vld [vmem:[%s2 + $0x1bc] sm:$0xff]
    %v2204 = vld [vmem:[%s2 + $0x1c4] sm:$0xf]
    %v2205 = vld [vmem:[%s2 + $0x1c8] sm:$0xff]
    %v2206 = vld [vmem:[%s2 + $0x1d0] sm:$0xf]
    %v2207 = vld [vmem:[%s2 + $0x1d4] sm:$0xff]
    %v2208 = vld [vmem:[%s2 + $0x1dc] sm:$0xf]
    %v2209 = vld [vmem:[%s2 + $0x1e0] sm:$0xff]
    %v2210 = vld [vmem:[%s2 + $0x1e8] sm:$0xf]
    %v2211 = vld [vmem:[%s2 + $0x1ec] sm:$0xff]
    %v2212 = vld [vmem:[%s2 + $0x1f4] sm:$0xf]
    %v2213 = vld [vmem:[%s2 + $0x1f8] sm:$0xff]
    %v2214 = vld [vmem:[%s2 + $0x200] sm:$0xf]
    %v2215 = vld [vmem:[%s2 + $0x204] sm:$0xff]
    %v2216 = vld [vmem:[%s2 + $0x20c] sm:$0xf]
    %v2217 = vld [vmem:[%s2 + $0x210] sm:$0xff]
    %v2218 = vld [vmem:[%s2 + $0x218] sm:$0xf]
    %v2219 = vld [vmem:[%s2 + $0x21c] sm:$0xff]
    %v2220 = vld [vmem:[%s2 + $0x224] sm:$0xf]
    %v2221 = vld [vmem:[%s2 + $0x228] sm:$0xff]
    %v2222 = vld [vmem:[%s2 + $0x230] sm:$0xf]
    %v2223 = vld [vmem:[%s2 + $0x234] sm:$0xff]
    %v2224 = vld [vmem:[%s2 + $0x23c] sm:$0xf]
    %v2225 = vld [vmem:[%s2 + $0x240] sm:$0xff]
    %v2226 = vld [vmem:[%s2 + $0x248] sm:$0xf]
    %v2227 = vld [vmem:[%s2 + $0x24c] sm:$0xff]
    %v2228 = vld [vmem:[%s2 + $0x254] sm:$0xf]
    %v2229 = vld [vmem:[%s2 + $0x258] sm:$0xff]
    %v2230 = vld [vmem:[%s2 + $0x260] sm:$0xf]
    %v2231 = vld [vmem:[%s2 + $0x264] sm:$0xff]
    %v2232 = vld [vmem:[%s2 + $0x26c] sm:$0xf]
    %v2233 = vld [vmem:[%s2 + $0x270] sm:$0xff]
    %v2234 = vld [vmem:[%s2 + $0x278] sm:$0xf]
    %v2235 = vld [vmem:[%s2 + $0x27c] sm:$0xff]
    %v2236 = vld [vmem:[%s2 + $0x284] sm:$0xf]
    %v2237 = vld [vmem:[%s2 + $0x288] sm:$0xff]
    %v2238 = vld [vmem:[%s2 + $0x290] sm:$0xf]
    %v2239 = vld [vmem:[%s2 + $0x294] sm:$0xff]
    %v2240 = vld [vmem:[%s2 + $0x29c] sm:$0xf]
    %v2241 = vld [vmem:[%s2 + $0x2a0] sm:$0xff]
    %v2242 = vld [vmem:[%s2 + $0x2a8] sm:$0xf]
    %v2243 = vld [vmem:[%s2 + $0x2ac] sm:$0xff]
    %v2244 = vld [vmem:[%s2 + $0x2b4] sm:$0xf]
    %v2245 = vld [vmem:[%s2 + $0x2b8] sm:$0xff]
    %v2246 = vld [vmem:[%s2 + $0x2c0] sm:$0xf]
    %v2247 = vld [vmem:[%s2 + $0x2c4] sm:$0xff]
    %v2248 = vld [vmem:[%s2 + $0x2cc] sm:$0xf]
    %v2249 = vld [vmem:[%s2 + $0x2d0] sm:$0xff]
    %v2250 = vld [vmem:[%s2 + $0x2d8] sm:$0xf]
    %v2251 = vld [vmem:[%s2 + $0x2dc] sm:$0xff]
    %v2252 = vld [vmem:[%s2 + $0x2e4] sm:$0xf]
    %v2253 = vld [vmem:[%s2 + $0x2e8] sm:$0xff]
    %v2254 = vld [vmem:[%s2 + $0x2f0] sm:$0xf]
    %v2255 = vld [vmem:[%s2 + $0x2f4] sm:$0xff]
    %v2256 = vld [vmem:[%s2 + $0x2fc] sm:$0xf]
    %v2257 = vld [vmem:[%s2 + $0x300] sm:$0xff]
    %v2258 = vld [vmem:[%s2 + $0x308] sm:$0xf]
    %v2259 = vld [vmem:[%s5] sm:$0x7]
    %v2261 = vperm.slane %v2259, 0
    %v2262 = vperm.slane %v2259, 1
    %v2263 = vperm.slane %v2259, 2
    %v2397 = vunpack.c.l.b16 %v2129
    %v2398 = vunpack.c.h.b16 %v2129
    %v2399 = vunpack.c.l.b16 %v2130
    %v2400 = vunpack.c.l.b16 %v2131
    %v2401 = vunpack.c.h.b16 %v2131
    %v2402 = vunpack.c.l.b16 %v2132
    %v2403 = vunpack.c.l.b16 %v2133
    %v2404 = vunpack.c.h.b16 %v2133
    %v2405 = vunpack.c.l.b16 %v2134
    %v2406 = vunpack.c.l.b16 %v2135
    %v2407 = vunpack.c.h.b16 %v2135
    %v2408 = vunpack.c.l.b16 %v2136
    %v2409 = vunpack.c.l.b16 %v2137
    %v2410 = vunpack.c.h.b16 %v2137
    %v2411 = vunpack.c.l.b16 %v2138
    %v2412 = vunpack.c.l.b16 %v2139
    %v2413 = vunpack.c.h.b16 %v2139
    %v2414 = vunpack.c.l.b16 %v2140
    %v2415 = vunpack.c.l.b16 %v2141
    %v2416 = vunpack.c.h.b16 %v2141
    %v2417 = vunpack.c.l.b16 %v2142
    %v2418 = vunpack.c.l.b16 %v2143
    %v2419 = vunpack.c.h.b16 %v2143
    %v2420 = vunpack.c.l.b16 %v2144
    %v2421 = vunpack.c.l.b16 %v2145
    %v2422 = vunpack.c.h.b16 %v2145
    %v2423 = vunpack.c.l.b16 %v2146
    %v2424 = vunpack.c.l.b16 %v2147
    %v2425 = vunpack.c.h.b16 %v2147
    %v2426 = vunpack.c.l.b16 %v2148
    %v2427 = vunpack.c.l.b16 %v2149
    %v2428 = vunpack.c.h.b16 %v2149
    %v2429 = vunpack.c.l.b16 %v2150
    %v2430 = vunpack.c.l.b16 %v2151
    %v2431 = vunpack.c.h.b16 %v2151
    %v2432 = vunpack.c.l.b16 %v2152
    %v2433 = vunpack.c.l.b16 %v2153
    %v2434 = vunpack.c.h.b16 %v2153
    %v2435 = vunpack.c.l.b16 %v2154
    %v2436 = vunpack.c.l.b16 %v2155
    %v2437 = vunpack.c.h.b16 %v2155
    %v2438 = vunpack.c.l.b16 %v2156
    %v2439 = vunpack.c.l.b16 %v2157
    %v2440 = vunpack.c.h.b16 %v2157
    %v2441 = vunpack.c.l.b16 %v2158
    %v2442 = vunpack.c.l.b16 %v2159
    %v2443 = vunpack.c.h.b16 %v2159
    %v2444 = vunpack.c.l.b16 %v2160
    %v2445 = vunpack.c.l.b16 %v2161
    %v2446 = vunpack.c.h.b16 %v2161
    %v2447 = vunpack.c.l.b16 %v2162
    %v2448 = vunpack.c.l.b16 %v2163
    %v2449 = vunpack.c.h.b16 %v2163
    %v2450 = vunpack.c.l.b16 %v2164
    %v2451 = vunpack.c.l.b16 %v2165
    %v2452 = vunpack.c.h.b16 %v2165
    %v2453 = vunpack.c.l.b16 %v2166
    %v2454 = vunpack.c.l.b16 %v2167
    %v2455 = vunpack.c.h.b16 %v2167
    %v2456 = vunpack.c.l.b16 %v2168
    %v2457 = vunpack.c.l.b16 %v2169
    %v2458 = vunpack.c.h.b16 %v2169
    %v2459 = vunpack.c.l.b16 %v2170
    %v2460 = vunpack.c.l.b16 %v2171
    %v2461 = vunpack.c.h.b16 %v2171
    %v2462 = vunpack.c.l.b16 %v2172
    %v2463 = vunpack.c.l.b16 %v2173
    %v2464 = vunpack.c.h.b16 %v2173
    %v2465 = vunpack.c.l.b16 %v2174
    %v2466 = vunpack.c.l.b16 %v2175
    %v2467 = vunpack.c.h.b16 %v2175
    %v2468 = vunpack.c.l.b16 %v2176
    %v2469 = vunpack.c.l.b16 %v2177
    %v2470 = vunpack.c.h.b16 %v2177
    %v2471 = vunpack.c.l.b16 %v2178
    %v2472 = vunpack.c.l.b16 %v2179
    %v2473 = vunpack.c.h.b16 %v2179
    %v2474 = vunpack.c.l.b16 %v2180
    %v2475 = vunpack.c.l.b16 %v2181
    %v2476 = vunpack.c.h.b16 %v2181
    %v2477 = vunpack.c.l.b16 %v2182
    %v2478 = vunpack.c.l.b16 %v2183
    %v2479 = vunpack.c.h.b16 %v2183
    %v2480 = vunpack.c.l.b16 %v2184
    %v2481 = vunpack.c.l.b16 %v2185
    %v2482 = vunpack.c.h.b16 %v2185
    %v2483 = vunpack.c.l.b16 %v2186
    %v2484 = vunpack.c.l.b16 %v2187
    %v2485 = vunpack.c.h.b16 %v2187
    %v2486 = vunpack.c.l.b16 %v2188
    %v2487 = vunpack.c.l.b16 %v2189
    %v2488 = vunpack.c.h.b16 %v2189
    %v2489 = vunpack.c.l.b16 %v2190
    %v2490 = vunpack.c.l.b16 %v2191
    %v2491 = vunpack.c.h.b16 %v2191
    %v2492 = vunpack.c.l.b16 %v2192
    %v2493 = vunpack.c.l.b16 %v2193
    %v2494 = vunpack.c.h.b16 %v2193
    %v2495 = vunpack.c.l.b16 %v2194
    %v2496 = vunpack.c.l.b16 %v2195
    %v2497 = vunpack.c.h.b16 %v2195
    %v2498 = vunpack.c.l.b16 %v2196
    %v2499 = vunpack.c.l.b16 %v2197
    %v2500 = vunpack.c.h.b16 %v2197
    %v2501 = vunpack.c.l.b16 %v2198
    %v2502 = vunpack.c.l.b16 %v2199
    %v2503 = vunpack.c.h.b16 %v2199
    %v2504 = vunpack.c.l.b16 %v2200
    %v2505 = vunpack.c.l.b16 %v2201
    %v2506 = vunpack.c.h.b16 %v2201
    %v2507 = vunpack.c.l.b16 %v2202
    %v2508 = vunpack.c.l.b16 %v2203
    %v2509 = vunpack.c.h.b16 %v2203
    %v2510 = vunpack.c.l.b16 %v2204
    %v2511 = vunpack.c.l.b16 %v2205
    %v2512 = vunpack.c.h.b16 %v2205
    %v2513 = vunpack.c.l.b16 %v2206
    %v2514 = vunpack.c.l.b16 %v2207
    %v2515 = vunpack.c.h.b16 %v2207
    %v2516 = vunpack.c.l.b16 %v2208
    %v2517 = vunpack.c.l.b16 %v2209
    %v2518 = vunpack.c.h.b16 %v2209
    %v2519 = vunpack.c.l.b16 %v2210
    %v2520 = vunpack.c.l.b16 %v2211
    %v2521 = vunpack.c.h.b16 %v2211
    %v2522 = vunpack.c.l.b16 %v2212
    %v2523 = vunpack.c.l.b16 %v2213
    %v2524 = vunpack.c.h.b16 %v2213
    %v2525 = vunpack.c.l.b16 %v2214
    %v2526 = vunpack.c.l.b16 %v2215
    %v2527 = vunpack.c.h.b16 %v2215
    %v2528 = vunpack.c.l.b16 %v2216
    %v2529 = vunpack.c.l.b16 %v2217
    %v2530 = vunpack.c.h.b16 %v2217
    %v2531 = vunpack.c.l.b16 %v2218
    %v2532 = vunpack.c.l.b16 %v2219
    %v2533 = vunpack.c.h.b16 %v2219
    %v2534 = vunpack.c.l.b16 %v2220
    %v2535 = vunpack.c.l.b16 %v2221
    %v2536 = vunpack.c.h.b16 %v2221
    %v2537 = vunpack.c.l.b16 %v2222
    %v2538 = vunpack.c.l.b16 %v2223
    %v2539 = vunpack.c.h.b16 %v2223
    %v2540 = vunpack.c.l.b16 %v2224
    %v2541 = vunpack.c.l.b16 %v2225
    %v2542 = vunpack.c.h.b16 %v2225
    %v2543 = vunpack.c.l.b16 %v2226
    %v2544 = vunpack.c.l.b16 %v2227
    %v2545 = vunpack.c.h.b16 %v2227
    %v2546 = vunpack.c.l.b16 %v2228
    %v2547 = vunpack.c.l.b16 %v2229
    %v2548 = vunpack.c.h.b16 %v2229
    %v2549 = vunpack.c.l.b16 %v2230
    %v2550 = vunpack.c.l.b16 %v2231
    %v2551 = vunpack.c.h.b16 %v2231
    %v2552 = vunpack.c.l.b16 %v2232
    %v2553 = vunpack.c.l.b16 %v2233
    %v2554 = vunpack.c.h.b16 %v2233
    %v2555 = vunpack.c.l.b16 %v2234
    %v2556 = vunpack.c.l.b16 %v2235
    %v2557 = vunpack.c.h.b16 %v2235
    %v2558 = vunpack.c.l.b16 %v2236
    %v2559 = vunpack.c.l.b16 %v2237
    %v2560 = vunpack.c.h.b16 %v2237
    %v2561 = vunpack.c.l.b16 %v2238
    %v2562 = vunpack.c.l.b16 %v2239
    %v2563 = vunpack.c.h.b16 %v2239
    %v2564 = vunpack.c.l.b16 %v2240
    %v2565 = vunpack.c.l.b16 %v2241
    %v2566 = vunpack.c.h.b16 %v2241
    %v2567 = vunpack.c.l.b16 %v2242
    %v2568 = vunpack.c.l.b16 %v2243
    %v2569 = vunpack.c.h.b16 %v2243
    %v2570 = vunpack.c.l.b16 %v2244
    %v2571 = vunpack.c.l.b16 %v2245
    %v2572 = vunpack.c.h.b16 %v2245
    %v2573 = vunpack.c.l.b16 %v2246
    %v2574 = vunpack.c.l.b16 %v2247
    %v2575 = vunpack.c.h.b16 %v2247
    %v2576 = vunpack.c.l.b16 %v2248
    %v2577 = vunpack.c.l.b16 %v2249
    %v2578 = vunpack.c.h.b16 %v2249
    %v2579 = vunpack.c.l.b16 %v2250
    %v2580 = vunpack.c.l.b16 %v2251
    %v2581 = vunpack.c.h.b16 %v2251
    %v2582 = vunpack.c.l.b16 %v2252
    %v2583 = vunpack.c.l.b16 %v2253
    %v2584 = vunpack.c.h.b16 %v2253
    %v2585 = vunpack.c.l.b16 %v2254
    %v2586 = vunpack.c.l.b16 %v2255
    %v2587 = vunpack.c.h.b16 %v2255
    %v2588 = vunpack.c.l.b16 %v2256
    %v2589 = vunpack.c.l.b16 %v2257
    %v2590 = vunpack.c.h.b16 %v2257
    %v2591 = vunpack.c.l.b16 %v2258
    %v2592 = vpack.c.b16 %v2400, %v2397
    %v2593 = vpack.c.b16 %v2401, %v2398
    %v2594 = vpack.c.b16 %v2402, %v2399
    %v2595 = vpack.c.b16 %v2406, %v2403
    %v2596 = vpack.c.b16 %v2407, %v2404
    %v2597 = vpack.c.b16 %v2408, %v2405
    %v2598 = vpack.c.b16 %v2412, %v2409
    %v2599 = vpack.c.b16 %v2413, %v2410
    %v2600 = vpack.c.b16 %v2414, %v2411
    %v2601 = vpack.c.b16 %v2418, %v2415
    %v2602 = vpack.c.b16 %v2419, %v2416
    %v2603 = vpack.c.b16 %v2420, %v2417
    %v2604 = vpack.c.b16 %v2424, %v2421
    %v2605 = vpack.c.b16 %v2425, %v2422
    %v2606 = vpack.c.b16 %v2426, %v2423
    %v2607 = vpack.c.b16 %v2430, %v2427
    %v2608 = vpack.c.b16 %v2431, %v2428
    %v2609 = vpack.c.b16 %v2432, %v2429
    %v2610 = vpack.c.b16 %v2436, %v2433
    %v2611 = vpack.c.b16 %v2437, %v2434
    %v2612 = vpack.c.b16 %v2438, %v2435
    %v2613 = vpack.c.b16 %v2442, %v2439
    %v2614 = vpack.c.b16 %v2443, %v2440
    %v2615 = vpack.c.b16 %v2444, %v2441
    %v2616 = vpack.c.b16 %v2448, %v2445
    %v2617 = vpack.c.b16 %v2449, %v2446
    %v2618 = vpack.c.b16 %v2450, %v2447
    %v2619 = vpack.c.b16 %v2454, %v2451
    %v2620 = vpack.c.b16 %v2455, %v2452
    %v2621 = vpack.c.b16 %v2456, %v2453
    %v2622 = vpack.c.b16 %v2460, %v2457
    %v2623 = vpack.c.b16 %v2461, %v2458
    %v2624 = vpack.c.b16 %v2462, %v2459
    %v2625 = vpack.c.b16 %v2466, %v2463
    %v2626 = vpack.c.b16 %v2467, %v2464
    %v2627 = vpack.c.b16 %v2468, %v2465
    %v2628 = vpack.c.b16 %v2472, %v2469
    %v2629 = vpack.c.b16 %v2473, %v2470
    %v2630 = vpack.c.b16 %v2474, %v2471
    %v2631 = vpack.c.b16 %v2478, %v2475
    %v2632 = vpack.c.b16 %v2479, %v2476
    %v2633 = vpack.c.b16 %v2480, %v2477
    %v2634 = vpack.c.b16 %v2484, %v2481
    %v2635 = vpack.c.b16 %v2485, %v2482
    %v2636 = vpack.c.b16 %v2486, %v2483
    %v2637 = vpack.c.b16 %v2490, %v2487
    %v2638 = vpack.c.b16 %v2491, %v2488
    %v2639 = vpack.c.b16 %v2492, %v2489
    %v2640 = vpack.c.b16 %v2496, %v2493
    %v2641 = vpack.c.b16 %v2497, %v2494
    %v2642 = vpack.c.b16 %v2498, %v2495
    %v2643 = vpack.c.b16 %v2502, %v2499
    %v2644 = vpack.c.b16 %v2503, %v2500
    %v2645 = vpack.c.b16 %v2504, %v2501
    %v2646 = vpack.c.b16 %v2508, %v2505
    %v2647 = vpack.c.b16 %v2509, %v2506
    %v2648 = vpack.c.b16 %v2510, %v2507
    %v2649 = vpack.c.b16 %v2514, %v2511
    %v2650 = vpack.c.b16 %v2515, %v2512
    %v2651 = vpack.c.b16 %v2516, %v2513
    %v2652 = vpack.c.b16 %v2520, %v2517
    %v2653 = vpack.c.b16 %v2521, %v2518
    %v2654 = vpack.c.b16 %v2522, %v2519
    %v2655 = vpack.c.b16 %v2526, %v2523
    %v2656 = vpack.c.b16 %v2527, %v2524
    %v2657 = vpack.c.b16 %v2528, %v2525
    %v2658 = vpack.c.b16 %v2532, %v2529
    %v2659 = vpack.c.b16 %v2533, %v2530
    %v2660 = vpack.c.b16 %v2534, %v2531
    %v2661 = vpack.c.b16 %v2538, %v2535
    %v2662 = vpack.c.b16 %v2539, %v2536
    %v2663 = vpack.c.b16 %v2540, %v2537
    %v2664 = vpack.c.b16 %v2544, %v2541
    %v2665 = vpack.c.b16 %v2545, %v2542
    %v2666 = vpack.c.b16 %v2546, %v2543
    %v2667 = vpack.c.b16 %v2550, %v2547
    %v2668 = vpack.c.b16 %v2551, %v2548
    %v2669 = vpack.c.b16 %v2552, %v2549
    %v2670 = vpack.c.b16 %v2556, %v2553
    %v2671 = vpack.c.b16 %v2557, %v2554
    %v2672 = vpack.c.b16 %v2558, %v2555
    %v2673 = vpack.c.b16 %v2562, %v2559
    %v2674 = vpack.c.b16 %v2563, %v2560
    %v2675 = vpack.c.b16 %v2564, %v2561
    %v2676 = vpack.c.b16 %v2568, %v2565
    %v2677 = vpack.c.b16 %v2569, %v2566
    %v2678 = vpack.c.b16 %v2570, %v2567
    %v2679 = vpack.c.b16 %v2574, %v2571
    %v2680 = vpack.c.b16 %v2575, %v2572
    %v2681 = vpack.c.b16 %v2576, %v2573
    %v2682 = vpack.c.b16 %v2580, %v2577
    %v2683 = vpack.c.b16 %v2581, %v2578
    %v2684 = vpack.c.b16 %v2582, %v2579
    %v2685 = vpack.c.b16 %v2586, %v2583
    %v2686 = vpack.c.b16 %v2587, %v2584
    %v2687 = vpack.c.b16 %v2588, %v2585
    %v2688 = vpack.c.b16 %v2589, %v2589
    %v2689 = vpack.c.b16 %v2590, %v2590
    %v2690 = vpack.c.b16 %v2591, %v2591
    %vm2787 = vcmask 64512
    %v2789 = vsel %vm2787, %v2128, 0
    %vm2791 = vcmask 1043456
    %v2793 = vsel %vm2791, %v2688, 0
    %v2796 = vsel %vm2791, %v2689, 0
    %v2799 = vsel %vm2791, %v2690, 0
    %2801 = vmatpush.bf16.msra.mxu0 %v2613
    %2802 = vmatpush.bf16.msra.mxu0 %v2610
    %2803 = vmatpush.bf16.msra.mxu0 %v2607
    %2804 = vmatpush.bf16.msra.mxu0 %v2604
    %2805 = vmatpush.bf16.msra.mxu0 %v2601
    %2806 = vmatpush.bf16.msra.mxu0 %v2598
    %2807 = vmatpush.bf16.msra.mxu0 %v2595
    %2808 = vmatpush.bf16.msra.mxu0 %v2592
    %2809 = vmatmul.bf16.gmra.mxu0 %v2124
    %v2810 = vpop.f32.mrf.mxu0
    %v2811 = vadd.f32 %v2261, %v2810
    %v2812 = vpop.f32.mrf.mxu0
    %2813 = vdwg.mxu0
    %2814 = vmatpush.bf16.msra.mxu0 %v2637
    %2815 = vmatpush.bf16.msra.mxu0 %v2634
    %2816 = vmatpush.bf16.msra.mxu0 %v2631
    %2817 = vmatpush.bf16.msra.mxu0 %v2628
    %2818 = vmatpush.bf16.msra.mxu0 %v2625
    %2819 = vmatpush.bf16.msra.mxu0 %v2622
    %2820 = vmatpush.bf16.msra.mxu0 %v2619
    %2821 = vmatpush.bf16.msra.mxu0 %v2616
    %2822 = vmatmul.bf16.gmra.mxu0 %v2125
    %v2823 = vpop.f32.mrf.mxu0
    %v2824 = vadd.f32 %v2811, %v2823
    %v2825 = vpop.f32.mrf.mxu0
    %2826 = vdwg.mxu0
    %2827 = vmatpush.bf16.msra.mxu0 %v2661
    %2828 = vmatpush.bf16.msra.mxu0 %v2658
    %2829 = vmatpush.bf16.msra.mxu0 %v2655
    %2830 = vmatpush.bf16.msra.mxu0 %v2652
    %2831 = vmatpush.bf16.msra.mxu0 %v2649
    %2832 = vmatpush.bf16.msra.mxu0 %v2646
    %2833 = vmatpush.bf16.msra.mxu0 %v2643
    %2834 = vmatpush.bf16.msra.mxu0 %v2640
    %2835 = vmatmul.bf16.gmra.mxu0 %v2126
    %v2836 = vpop.f32.mrf.mxu0
    %v2837 = vadd.f32 %v2824, %v2836
    %v2838 = vpop.f32.mrf.mxu0
    %2839 = vdwg.mxu0
    %2840 = vmatpush.bf16.msra.mxu0 %v2685
    %2841 = vmatpush.bf16.msra.mxu0 %v2682
    %2842 = vmatpush.bf16.msra.mxu0 %v2679
    %2843 = vmatpush.bf16.msra.mxu0 %v2676
    %2844 = vmatpush.bf16.msra.mxu0 %v2673
    %2845 = vmatpush.bf16.msra.mxu0 %v2670
    %2846 = vmatpush.bf16.msra.mxu0 %v2667
    %2847 = vmatpush.bf16.msra.mxu0 %v2664
    %2848 = vmatmul.bf16.gmra.mxu0 %v2127
    %v2849 = vpop.f32.mrf.mxu0
    %v2850 = vadd.f32 %v2837, %v2849
    %v2851 = vpop.f32.mrf.mxu0
    %2852 = vdwg.mxu0
    %2853 = vmatpush.bf16.msra.mxu0 0
    %2854 = vmatpush.bf16.msra.mxu0 0
    %2855 = vmatpush.bf16.msra.mxu0 0
    %2856 = vmatpush.bf16.msra.mxu0 0
    %2857 = vmatpush.bf16.msra.mxu0 0
    %2858 = vmatpush.bf16.msra.mxu0 0
    %2859 = vmatpush.bf16.msra.mxu0 0
    %2860 = vmatpush.bf16.msra.mxu0 %v2793
    %2861 = vmatmul.bf16.gmra.mxu0 %v2789
    %v2862 = vpop.f32.mrf.mxu0
    %v2863 = vadd.f32 %v2850, %v2862
    %v2864 = vpop.f32.mrf.mxu0
    %2865 = vdwg.mxu0
    %2866 = vmatpush.bf16.msra.mxu0 %v2614
    %2867 = vmatpush.bf16.msra.mxu0 %v2611
    %2868 = vmatpush.bf16.msra.mxu0 %v2608
    %2869 = vmatpush.bf16.msra.mxu0 %v2605
    %2870 = vmatpush.bf16.msra.mxu0 %v2602
    %2871 = vmatpush.bf16.msra.mxu0 %v2599
    %2872 = vmatpush.bf16.msra.mxu0 %v2596
    %2873 = vmatpush.bf16.msra.mxu0 %v2593
    %2874 = vmatmul.bf16.gmra.mxu0 %v2124
    %v2875 = vpop.f32.mrf.mxu0
    %v2876 = vadd.f32 %v2262, %v2875
    %v2877 = vpop.f32.mrf.mxu0
    %2878 = vdwg.mxu0
    %2879 = vmatpush.bf16.msra.mxu0 %v2638
    %2880 = vmatpush.bf16.msra.mxu0 %v2635
    %2881 = vmatpush.bf16.msra.mxu0 %v2632
    %2882 = vmatpush.bf16.msra.mxu0 %v2629
    %2883 = vmatpush.bf16.msra.mxu0 %v2626
    %2884 = vmatpush.bf16.msra.mxu0 %v2623
    %2885 = vmatpush.bf16.msra.mxu0 %v2620
    %2886 = vmatpush.bf16.msra.mxu0 %v2617
    %2887 = vmatmul.bf16.gmra.mxu0 %v2125
    %v2888 = vpop.f32.mrf.mxu0
    %v2889 = vadd.f32 %v2876, %v2888
    %v2890 = vpop.f32.mrf.mxu0
    %2891 = vdwg.mxu0
    %2892 = vmatpush.bf16.msra.mxu0 %v2662
    %2893 = vmatpush.bf16.msra.mxu0 %v2659
    %2894 = vmatpush.bf16.msra.mxu0 %v2656
    %2895 = vmatpush.bf16.msra.mxu0 %v2653
    %2896 = vmatpush.bf16.msra.mxu0 %v2650
    %2897 = vmatpush.bf16.msra.mxu0 %v2647
    %2898 = vmatpush.bf16.msra.mxu0 %v2644
    %2899 = vmatpush.bf16.msra.mxu0 %v2641
    %2900 = vmatmul.bf16.gmra.mxu0 %v2126
    %v2901 = vpop.f32.mrf.mxu0
    %v2902 = vadd.f32 %v2889, %v2901
    %v2903 = vpop.f32.mrf.mxu0
    %2904 = vdwg.mxu0
    %2905 = vmatpush.bf16.msra.mxu0 %v2686
    %2906 = vmatpush.bf16.msra.mxu0 %v2683
    %2907 = vmatpush.bf16.msra.mxu0 %v2680
    %2908 = vmatpush.bf16.msra.mxu0 %v2677
    %2909 = vmatpush.bf16.msra.mxu0 %v2674
    %2910 = vmatpush.bf16.msra.mxu0 %v2671
    %2911 = vmatpush.bf16.msra.mxu0 %v2668
    %2912 = vmatpush.bf16.msra.mxu0 %v2665
    %2913 = vmatmul.bf16.gmra.mxu0 %v2127
    %v2914 = vpop.f32.mrf.mxu0
    %v2915 = vadd.f32 %v2902, %v2914
    %v2916 = vpop.f32.mrf.mxu0
    %2917 = vdwg.mxu0
    %2918 = vmatpush.bf16.msra.mxu0 0
    %2919 = vmatpush.bf16.msra.mxu0 0
    %2920 = vmatpush.bf16.msra.mxu0 0
    %2921 = vmatpush.bf16.msra.mxu0 0
    %2922 = vmatpush.bf16.msra.mxu0 0
    %2923 = vmatpush.bf16.msra.mxu0 0
    %2924 = vmatpush.bf16.msra.mxu0 0
    %2925 = vmatpush.bf16.msra.mxu0 %v2796
    %2926 = vmatmul.bf16.gmra.mxu0 %v2789
    %v2927 = vpop.f32.mrf.mxu0
    %v2928 = vadd.f32 %v2915, %v2927
    %v2929 = vpop.f32.mrf.mxu0
    %2930 = vdwg.mxu0
    %2931 = vmatpush.bf16.msra.mxu0 %v2615
    %2932 = vmatpush.bf16.msra.mxu0 %v2612
    %2933 = vmatpush.bf16.msra.mxu0 %v2609
    %2934 = vmatpush.bf16.msra.mxu0 %v2606
    %2935 = vmatpush.bf16.msra.mxu0 %v2603
    %2936 = vmatpush.bf16.msra.mxu0 %v2600
    %2937 = vmatpush.bf16.msra.mxu0 %v2597
    %2938 = vmatpush.bf16.msra.mxu0 %v2594
    %2939 = vmatmul.bf16.gmra.mxu0 %v2124
    %v2940 = vpop.f32.mrf.mxu0
    %v2941 = vadd.f32 %v2263, %v2940
    %v2942 = vpop.f32.mrf.mxu0
    %2943 = vdwg.mxu0
    %2944 = vmatpush.bf16.msra.mxu0 %v2639
    %2945 = vmatpush.bf16.msra.mxu0 %v2636
    %2946 = vmatpush.bf16.msra.mxu0 %v2633
    %2947 = vmatpush.bf16.msra.mxu0 %v2630
    %2948 = vmatpush.bf16.msra.mxu0 %v2627
    %2949 = vmatpush.bf16.msra.mxu0 %v2624
    %2950 = vmatpush.bf16.msra.mxu0 %v2621
    %2951 = vmatpush.bf16.msra.mxu0 %v2618
    %2952 = vmatmul.bf16.gmra.mxu0 %v2125
    %v2953 = vpop.f32.mrf.mxu0
    %v2954 = vadd.f32 %v2941, %v2953
    %v2955 = vpop.f32.mrf.mxu0
    %2956 = vdwg.mxu0
    %2957 = vmatpush.bf16.msra.mxu0 %v2663
    %2958 = vmatpush.bf16.msra.mxu0 %v2660
    %2959 = vmatpush.bf16.msra.mxu0 %v2657
    %2960 = vmatpush.bf16.msra.mxu0 %v2654
    %2961 = vmatpush.bf16.msra.mxu0 %v2651
    %2962 = vmatpush.bf16.msra.mxu0 %v2648
    %2963 = vmatpush.bf16.msra.mxu0 %v2645
    %2964 = vmatpush.bf16.msra.mxu0 %v2642
    %2965 = vmatmul.bf16.gmra.mxu0 %v2126
    %v2966 = vpop.f32.mrf.mxu0
    %v2967 = vadd.f32 %v2954, %v2966
    %v2968 = vpop.f32.mrf.mxu0
    %2969 = vdwg.mxu0
    %2970 = vmatpush.bf16.msra.mxu0 %v2687
    %2971 = vmatpush.bf16.msra.mxu0 %v2684
    %2972 = vmatpush.bf16.msra.mxu0 %v2681
    %2973 = vmatpush.bf16.msra.mxu0 %v2678
    %2974 = vmatpush.bf16.msra.mxu0 %v2675
    %2975 = vmatpush.bf16.msra.mxu0 %v2672
    %2976 = vmatpush.bf16.msra.mxu0 %v2669
    %2977 = vmatpush.bf16.msra.mxu0 %v2666
    %2978 = vmatmul.bf16.gmra.mxu0 %v2127
    %v2979 = vpop.f32.mrf.mxu0
    %v2980 = vadd.f32 %v2967, %v2979
    %v2981 = vpop.f32.mrf.mxu0
    %2982 = vdwg.mxu0
    %2983 = vmatpush.bf16.msra.mxu0 0
    %2984 = vmatpush.bf16.msra.mxu0 0
    %2985 = vmatpush.bf16.msra.mxu0 0
    %2986 = vmatpush.bf16.msra.mxu0 0
    %2987 = vmatpush.bf16.msra.mxu0 0
    %2988 = vmatpush.bf16.msra.mxu0 0
    %2989 = vmatpush.bf16.msra.mxu0 0
    %2990 = vmatpush.bf16.msra.mxu0 %v2799
    %2991 = vmatmul.bf16.gmra.mxu0 %v2789
    %v2992 = vpop.f32.mrf.mxu0
    %v2993 = vadd.f32 %v2980, %v2992
    %v2994 = vpop.f32.mrf.mxu0
    %2995 = vdwg.mxu0
    %v2996 = vmax.f32 %v2863, 0.0
    %v2997 = vmax.f32 %v2928, 0.0
    %v2998 = vmax.f32 %v2993, 0.0
    %v2999 = vpack.c.bf16 %v2996, %v2996
    %v3000 = vpack.c.bf16 %v2997, %v2997
    %v3001 = vpack.c.bf16 %v2998, %v2998
    %v3002 = vld [vmem:[%s3] sm:$0xff]
    %v3003 = vld [vmem:[%s3 + $0x8] sm:$0xff]
    %v3004 = vld [vmem:[%s3 + $0x10] sm:$0xff]
    %v3005 = vld [vmem:[%s3 + $0x18] sm:$0xff]
    %v3006 = vld [vmem:[%s3 + $0x20] sm:$0xff]
    %v3007 = vld [vmem:[%s3 + $0x28] sm:$0xff]
    %v3008 = vld [vmem:[%s3 + $0x30] sm:$0xff]
    %v3009 = vld [vmem:[%s3 + $0x38] sm:$0xff]
    %v3010 = vld [vmem:[%s3 + $0x40] sm:$0xff]
    %v3011 = vld [vmem:[%s3 + $0x48] sm:$0xff]
    %v3012 = vld [vmem:[%s3 + $0x50] sm:$0xff]
    %v3013 = vld [vmem:[%s3 + $0x58] sm:$0xff]
    %v3014 = vld [vmem:[%s3 + $0x60] sm:$0xff]
    %v3015 = vld [vmem:[%s3 + $0x68] sm:$0xff]
    %v3016 = vld [vmem:[%s3 + $0x70] sm:$0xff]
    %v3017 = vld [vmem:[%s3 + $0x78] sm:$0xff]
    %v3018 = vld [vmem:[%s3 + $0x80] sm:$0xff]
    %v3019 = vld [vmem:[%s3 + $0x88] sm:$0xff]
    %v3020 = vld [vmem:[%s3 + $0x90] sm:$0xff]
    %v3021 = vld [vmem:[%s3 + $0x98] sm:$0xff]
    %v3022 = vld [vmem:[%s3 + $0xa0] sm:$0xff]
    %v3023 = vld [vmem:[%s3 + $0xa8] sm:$0xff]
    %v3024 = vld [vmem:[%s3 + $0xb0] sm:$0xff]
    %v3025 = vld [vmem:[%s3 + $0xb8] sm:$0xff]
    %v3026 = vld [vmem:[%s3 + $0xc0] sm:$0xff]
    %v3027 = vld [vmem:[%s3 + $0xc8] sm:$0xff]
    %v3028 = vld [vmem:[%s3 + $0xd0] sm:$0xff]
    %v3029 = vld [vmem:[%s3 + $0xd8] sm:$0xff]
    %v3030 = vld [vmem:[%s3 + $0xe0] sm:$0xff]
    %v3031 = vld [vmem:[%s3 + $0xe8] sm:$0xff]
    %v3032 = vld [vmem:[%s3 + $0xf0] sm:$0xff]
    %v3033 = vld [vmem:[%s3 + $0xf8] sm:$0xff]
    %v3034 = vld [vmem:[%s3 + $0x100] sm:$0xff]
    %v3035 = vld [vmem:[%s3 + $0x108] sm:$0xff]
    %v3036 = vld [vmem:[%s3 + $0x110] sm:$0xff]
    %v3037 = vld [vmem:[%s6] sm:$0x3]
    %v3039 = vperm.slane %v3037, 0
    %v3040 = vperm.slane %v3037, 1
    %v3078 = vunpack.c.l.b16 %v3002
    %v3079 = vunpack.c.h.b16 %v3002
    %v3080 = vunpack.c.l.b16 %v3003
    %v3081 = vunpack.c.h.b16 %v3003
    %v3082 = vunpack.c.l.b16 %v3004
    %v3083 = vunpack.c.h.b16 %v3004
    %v3084 = vunpack.c.l.b16 %v3005
    %v3085 = vunpack.c.h.b16 %v3005
    %v3086 = vunpack.c.l.b16 %v3006
    %v3087 = vunpack.c.h.b16 %v3006
    %v3088 = vunpack.c.l.b16 %v3007
    %v3089 = vunpack.c.h.b16 %v3007
    %v3090 = vunpack.c.l.b16 %v3008
    %v3091 = vunpack.c.h.b16 %v3008
    %v3092 = vunpack.c.l.b16 %v3009
    %v3093 = vunpack.c.h.b16 %v3009
    %v3094 = vunpack.c.l.b16 %v3010
    %v3095 = vunpack.c.h.b16 %v3010
    %v3096 = vunpack.c.l.b16 %v3011
    %v3097 = vunpack.c.h.b16 %v3011
    %v3098 = vunpack.c.l.b16 %v3012
    %v3099 = vunpack.c.h.b16 %v3012
    %v3100 = vunpack.c.l.b16 %v3013
    %v3101 = vunpack.c.h.b16 %v3013
    %v3102 = vunpack.c.l.b16 %v3014
    %v3103 = vunpack.c.h.b16 %v3014
    %v3104 = vunpack.c.l.b16 %v3015
    %v3105 = vunpack.c.h.b16 %v3015
    %v3106 = vunpack.c.l.b16 %v3016
    %v3107 = vunpack.c.h.b16 %v3016
    %v3108 = vunpack.c.l.b16 %v3017
    %v3109 = vunpack.c.h.b16 %v3017
    %v3110 = vunpack.c.l.b16 %v3018
    %v3111 = vunpack.c.h.b16 %v3018
    %v3112 = vunpack.c.l.b16 %v3019
    %v3113 = vunpack.c.h.b16 %v3019
    %v3114 = vunpack.c.l.b16 %v3020
    %v3115 = vunpack.c.h.b16 %v3020
    %v3116 = vunpack.c.l.b16 %v3021
    %v3117 = vunpack.c.h.b16 %v3021
    %v3118 = vunpack.c.l.b16 %v3022
    %v3119 = vunpack.c.h.b16 %v3022
    %v3120 = vunpack.c.l.b16 %v3023
    %v3121 = vunpack.c.h.b16 %v3023
    %v3122 = vunpack.c.l.b16 %v3024
    %v3123 = vunpack.c.h.b16 %v3024
    %v3124 = vunpack.c.l.b16 %v3025
    %v3125 = vunpack.c.h.b16 %v3025
    %v3126 = vunpack.c.l.b16 %v3026
    %v3127 = vunpack.c.h.b16 %v3026
    %v3128 = vunpack.c.l.b16 %v3027
    %v3129 = vunpack.c.h.b16 %v3027
    %v3130 = vunpack.c.l.b16 %v3028
    %v3131 = vunpack.c.h.b16 %v3028
    %v3132 = vunpack.c.l.b16 %v3029
    %v3133 = vunpack.c.h.b16 %v3029
    %v3134 = vunpack.c.l.b16 %v3030
    %v3135 = vunpack.c.h.b16 %v3030
    %v3136 = vunpack.c.l.b16 %v3031
    %v3137 = vunpack.c.h.b16 %v3031
    %v3138 = vunpack.c.l.b16 %v3032
    %v3139 = vunpack.c.h.b16 %v3032
    %v3140 = vunpack.c.l.b16 %v3033
    %v3141 = vunpack.c.h.b16 %v3033
    %v3142 = vunpack.c.l.b16 %v3034
    %v3143 = vunpack.c.h.b16 %v3034
    %v3144 = vunpack.c.l.b16 %v3035
    %v3145 = vunpack.c.h.b16 %v3035
    %v3146 = vunpack.c.l.b16 %v3036
    %v3147 = vunpack.c.h.b16 %v3036
    %v3148 = vpack.c.b16 %v3080, %v3078
    %v3149 = vpack.c.b16 %v3081, %v3079
    %v3150 = vpack.c.b16 %v3084, %v3082
    %v3151 = vpack.c.b16 %v3085, %v3083
    %v3152 = vpack.c.b16 %v3088, %v3086
    %v3153 = vpack.c.b16 %v3089, %v3087
    %v3154 = vpack.c.b16 %v3092, %v3090
    %v3155 = vpack.c.b16 %v3093, %v3091
    %v3156 = vpack.c.b16 %v3096, %v3094
    %v3157 = vpack.c.b16 %v3097, %v3095
    %v3158 = vpack.c.b16 %v3100, %v3098
    %v3159 = vpack.c.b16 %v3101, %v3099
    %v3160 = vpack.c.b16 %v3104, %v3102
    %v3161 = vpack.c.b16 %v3105, %v3103
    %v3162 = vpack.c.b16 %v3108, %v3106
    %v3163 = vpack.c.b16 %v3109, %v3107
    %v3164 = vpack.c.b16 %v3112, %v3110
    %v3165 = vpack.c.b16 %v3113, %v3111
    %v3166 = vpack.c.b16 %v3116, %v3114
    %v3167 = vpack.c.b16 %v3117, %v3115
    %v3168 = vpack.c.b16 %v3120, %v3118
    %v3169 = vpack.c.b16 %v3121, %v3119
    %v3170 = vpack.c.b16 %v3124, %v3122
    %v3171 = vpack.c.b16 %v3125, %v3123
    %v3172 = vpack.c.b16 %v3128, %v3126
    %v3173 = vpack.c.b16 %v3129, %v3127
    %v3174 = vpack.c.b16 %v3132, %v3130
    %v3175 = vpack.c.b16 %v3133, %v3131
    %v3176 = vpack.c.b16 %v3136, %v3134
    %v3177 = vpack.c.b16 %v3137, %v3135
    %v3178 = vpack.c.b16 %v3140, %v3138
    %v3179 = vpack.c.b16 %v3141, %v3139
    %v3180 = vpack.c.b16 %v3144, %v3142
    %v3181 = vpack.c.b16 %v3145, %v3143
    %v3182 = vpack.c.b16 %v3146, %v3146
    %v3183 = vpack.c.b16 %v3147, %v3147
    %vm3218 = vcmask 195584
    %v3220 = vsel %vm3218, %v3001, 0
    %v3223 = vsel %vm2791, %v3182, 0
    %v3226 = vsel %vm2791, %v3183, 0
    %3228 = vmatpush.bf16.msra.mxu0 %v3162
    %3229 = vmatpush.bf16.msra.mxu0 %v3160
    %3230 = vmatpush.bf16.msra.mxu0 %v3158
    %3231 = vmatpush.bf16.msra.mxu0 %v3156
    %3232 = vmatpush.bf16.msra.mxu0 %v3154
    %3233 = vmatpush.bf16.msra.mxu0 %v3152
    %3234 = vmatpush.bf16.msra.mxu0 %v3150
    %3235 = vmatpush.bf16.msra.mxu0 %v3148
    %3236 = vmatmul.bf16.gmra.mxu0 %v2999
    %v3237 = vpop.f32.mrf.mxu0
    %v3238 = vadd.f32 %v3039, %v3237
    %v3239 = vpop.f32.mrf.mxu0
    %3240 = vdwg.mxu0
    %3241 = vmatpush.bf16.msra.mxu0 %v3178
    %3242 = vmatpush.bf16.msra.mxu0 %v3176
    %3243 = vmatpush.bf16.msra.mxu0 %v3174
    %3244 = vmatpush.bf16.msra.mxu0 %v3172
    %3245 = vmatpush.bf16.msra.mxu0 %v3170
    %3246 = vmatpush.bf16.msra.mxu0 %v3168
    %3247 = vmatpush.bf16.msra.mxu0 %v3166
    %3248 = vmatpush.bf16.msra.mxu0 %v3164
    %3249 = vmatmul.bf16.gmra.mxu0 %v3000
    %v3250 = vpop.f32.mrf.mxu0
    %v3251 = vadd.f32 %v3238, %v3250
    %v3252 = vpop.f32.mrf.mxu0
    %3253 = vdwg.mxu0
    %3254 = vmatpush.bf16.msra.mxu0 0
    %3255 = vmatpush.bf16.msra.mxu0 0
    %3256 = vmatpush.bf16.msra.mxu0 0
    %3257 = vmatpush.bf16.msra.mxu0 0
    %3258 = vmatpush.bf16.msra.mxu0 0
    %3259 = vmatpush.bf16.msra.mxu0 0
    %3260 = vmatpush.bf16.msra.mxu0 %v3223
    %3261 = vmatpush.bf16.msra.mxu0 %v3180
    %3262 = vmatmul.bf16.gmra.mxu0 %v3220
    %v3263 = vpop.f32.mrf.mxu0
    %v3264 = vadd.f32 %v3251, %v3263
    %v3265 = vpop.f32.mrf.mxu0
    %3266 = vdwg.mxu0
    %3267 = vmatpush.bf16.msra.mxu0 %v3163
    %3268 = vmatpush.bf16.msra.mxu0 %v3161
    %3269 = vmatpush.bf16.msra.mxu0 %v3159
    %3270 = vmatpush.bf16.msra.mxu0 %v3157
    %3271 = vmatpush.bf16.msra.mxu0 %v3155
    %3272 = vmatpush.bf16.msra.mxu0 %v3153
    %3273 = vmatpush.bf16.msra.mxu0 %v3151
    %3274 = vmatpush.bf16.msra.mxu0 %v3149
    %3275 = vmatmul.bf16.gmra.mxu0 %v2999
    %v3276 = vpop.f32.mrf.mxu0
    %v3277 = vadd.f32 %v3040, %v3276
    %v3278 = vpop.f32.mrf.mxu0
    %3279 = vdwg.mxu0
    %3280 = vmatpush.bf16.msra.mxu0 %v3179
    %3281 = vmatpush.bf16.msra.mxu0 %v3177
    %3282 = vmatpush.bf16.msra.mxu0 %v3175
    %3283 = vmatpush.bf16.msra.mxu0 %v3173
    %3284 = vmatpush.bf16.msra.mxu0 %v3171
    %3285 = vmatpush.bf16.msra.mxu0 %v3169
    %3286 = vmatpush.bf16.msra.mxu0 %v3167
    %3287 = vmatpush.bf16.msra.mxu0 %v3165
    %3288 = vmatmul.bf16.gmra.mxu0 %v3000
    %v3289 = vpop.f32.mrf.mxu0
    %v3290 = vadd.f32 %v3277, %v3289
    %v3291 = vpop.f32.mrf.mxu0
    %3292 = vdwg.mxu0
    %3293 = vmatpush.bf16.msra.mxu0 0
    %3294 = vmatpush.bf16.msra.mxu0 0
    %3295 = vmatpush.bf16.msra.mxu0 0
    %3296 = vmatpush.bf16.msra.mxu0 0
    %3297 = vmatpush.bf16.msra.mxu0 0
    %3298 = vmatpush.bf16.msra.mxu0 0
    %3299 = vmatpush.bf16.msra.mxu0 %v3226
    %3300 = vmatpush.bf16.msra.mxu0 %v3181
    %3301 = vmatmul.bf16.gmra.mxu0 %v3220
    %v3302 = vpop.f32.mrf.mxu0
    %v3303 = vadd.f32 %v3290, %v3302
    %v3304 = vpop.f32.mrf.mxu0
    %3305 = vdwg.mxu0
    %v3306 = vmax.f32 %v3264, 0.0
    %v3307 = vmax.f32 %v3303, 0.0
    %v3310 = vrot.slane %v3307, 6
    %vm3311 = vcmask 1041408
    %v3312 = vsel %vm3311, %v3306, %v3310
    %vm3313 = vcmask 1043458
    %v3314 = vsel %vm3313, %v3306, %v3310
    %v3315 = vrot.slane %v3314, 2
    %vm3316 = vcmask 1045508
    %v3317 = vsel %vm3316, %v3306, %v3310
    %v3318 = vrot.slane %v3317, 4
    %vm3319 = vcmask 1045504
    %v3320 = vsel %vm3319, %v3310, %v3306
    %v3321 = vrot.slane %v3320, 6
    %vm3326 = vcmask 93186
    %vm3327 = vmor %vm3326, %vm3311
    %3328 = vst.msk [vmem:[#allocation2] sm:$0xf] %vm3327, %v3312
    %3329 = vst.msk [vmem:[#allocation2 + $0x4] sm:$0xf] %vm3327, %v3315
    %3330 = vst.msk [vmem:[#allocation2 + $0x8] sm:$0xf] %vm3327, %v3318
    %3331 = vst.msk [vmem:[#allocation2 + $0xc] sm:$0xf] %vm3327, %v3321
    // Predicated region
    $region30: #{encoder_forward.1} parent=1 // pred_check
      _
    $region31: #{encoder_forward.1} parent=1 // pred_check_branch
      %3333 = sbr.rel (0) target = $region33
    $region32: #{encoder_forward.1} parent=1 // pred_region
      %3335 = vsyncadd [#allocation3], 192
      %s3336 = sshll.u32 [#allocation2], 4
      %s3337 = int_to_ptr.vmem [resolvable:$true] %s3336
      %s3338 = sshll.u32 %s7, 4
      %s3339 = int_to_ptr.hbm [resolvable:$true] %s3338
      %3344 = dma.vmem_to_hbm [thread:$0]  %s3337, 64, %s3339, [#allocation3], 64, 64, 4
    $region33: #{encoder_forward.1} parent=1 // pred_fallthru
      _
    // Predicated region
    $region34: #{encoder_forward.1} parent=1 // pred_check
      _
    $region35: #{encoder_forward.1} parent=1 // pred_check_branch
      %3346 = sbr.rel (0) target = $region37
    $region36: #{encoder_forward.1} parent=1 // pred_region
      %3348 = dma.done [#allocation3], 256
    $region37: #{encoder_forward.1} parent=1 // pred_fallthru
      _
    %3349 = vsyncpa [#allocation3], 1

</llo_original>
